<compile_context>
chip_gen: v7x
topology: tpu7x:2x2x1
jax: 0.10.0
libtpu: 0.0.40
codegen_flags: <defaults>
</compile_context>

<pallas_src>
import functools

import jax
import jax.numpy as jnp
import numpy as np
from jax.experimental import pallas as pl
from jax.experimental.pallas import tpu as pltpu

DEPTH = 4  # depth_codebook hard-coded in the reference forward


def _lfq_kernel(z_ref, zq_ref, idx_ref, csum_ref, *, depth, token_bits):
    """Lookup-free residual quantization on one (batch, row-chunk) tile.

    Block layout (NCHW-native; channels on the leading non-vreg axis):
      z_ref   : (1, C, K, L)  f32   input
      zq_ref  : (1, C, K, L)  f32   cumulative quantized value (ST forward value)
      idx_ref : (1, D, K, L)  i32   per-depth codebook indices (lane-dense)
      csum_ref: (1, 1, 1, 1)  f32   this tile's sum of squared commitment errors
    """
    z = z_ref[0]                                   # (C, K, L) f32
    cum = jnp.zeros_like(z)
    sq_acc = jnp.zeros_like(z)

    for si in range(depth):                        # static unroll (depth == 4)
        residual = z - cum
        # (zq_{s-1} - residual_{s-1})^2 == residual_s^2, so the commitment terms
        # are just the squared residuals of steps 1..depth (last one added after
        # the loop), accumulated elementwise -> one reduction per tile.
        if si > 0:
            sq_acc = sq_acc + residual * residual
        pos = residual > 0.0                       # (C, K, L) bool
        scale = 1.0 / (2.0 ** si)
        zq = jnp.where(pos, jnp.float32(scale), jnp.float32(-scale))
        # convert_bits_to_indices: idx = sum_c [residual_c > 0] * 2^c.
        # C is the leading block axis, so this is (token_bits-1) VALU adds over
        # dense (K, L) slabs -- no padded cross-sublane XLU reduce.
        idx = jnp.where(pos[0], jnp.int32(1), jnp.int32(0))
        for c in range(1, token_bits):
            idx = idx + jnp.where(pos[c], jnp.int32(1 << c), jnp.int32(0))
        idx_ref[0, si] = idx
        cum = cum + zq

    residual = z - cum
    sq_acc = sq_acc + residual * residual

    zq_ref[0] = cum
    total = jnp.sum(sq_acc, axis=0)                            # (K, L) VALU adds
    csum_ref[...] = jnp.sum(total, keepdims=True)[None, None]  # (1, 1, 1, 1)


def _pick_lane_dim(hw):
    for lane in (512, 256, 128):
        if hw % lane == 0:
            return lane
    return hw  # tiny / odd spatial extents: full-extent lane dim


def _pick_row_tile(rows, cap):
    """Largest divisor of `rows` that is <= cap and a multiple of 8 (full sublane
    occupancy); falls back to the full extent (always layout-legal)."""
    cap = max(1, min(rows, cap))
    for d in range(cap - cap % 8, 0, -8):
        if rows % d == 0:
            return d
    return rows


def lookup_free_quantize(z_nchw, *, token_bits=10, commitment_cost=0.25,
                         depth=DEPTH):
    B, C, H, W = z_nchw.shape
    assert C == token_bits, "channel dim must equal token_bits"
    HW = H * W

    lane = _pick_lane_dim(HW)
    rows = HW // lane
    elem_cap = max(1, 32768 // lane)            # ~32K elems per channel per step
    tiles_cap = max(8, (B * rows) // 8)         # keep >= ~8 tiles for v7x megacore
    k_rows = _pick_row_tile(rows, min(elem_cap, tiles_cap))
    n_row_tiles = rows // k_rows

    # NCHW is already (b, c, hw)-contiguous, so splitting hw -> (rows, lane) is a
    # free reshape: the kernel consumes/produces the NCHW layout directly.
    z4 = z_nchw.reshape(B, C, rows, lane).astype(jnp.float32)

    zq4, idx4, csum = pl.pallas_call(
        functools.partial(_lfq_kernel, depth=depth, token_bits=token_bits),
        out_shape=(
            jax.ShapeDtypeStruct((B, C, rows, lane), jnp.float32),    # z_quantized
            jax.ShapeDtypeStruct((B, depth, rows, lane), jnp.int32),  # indices
            jax.ShapeDtypeStruct((B, n_row_tiles, 1, 1), jnp.float32),  # sq-err sums
        ),
        grid=(B, n_row_tiles),
        in_specs=[
            pl.BlockSpec((1, C, k_rows, lane), lambda b, g: (b, 0, g, 0)),
        ],
        out_specs=(
            pl.BlockSpec((1, C, k_rows, lane), lambda b, g: (b, 0, g, 0)),
            pl.BlockSpec((1, depth, k_rows, lane), lambda b, g: (b, 0, g, 0)),
            pl.BlockSpec((1, 1, 1, 1), lambda b, g: (b, g, 0, 0)),
        ),
        compiler_params=pltpu.CompilerParams(
            dimension_semantics=("parallel", "parallel"),
            vmem_limit_bytes=32 * 1024 * 1024),
    )(z4)

    # glue back to the PyTorch output shapes (no transposes on the big tensors)
    z_quantized = zq4.reshape(B, C, H, W)                               # free
    min_encoding_indices = jnp.transpose(idx4.reshape(B, depth, H, W),
                                         (0, 2, 3, 1))                  # (B,H,W,D)

    # Reconstruct bitwise tokens / per-depth quantized residuals from the indices
    # (bit c of idx_si == 1  <=>  sign_si[c] == +1); exact by construction.
    c_range = jnp.arange(C, dtype=jnp.int32)
    bit01 = (min_encoding_indices[..., None, :] >> c_range[:, None]) & 1  # (B,H,W,C,D)
    bitwise_tokens = (bit01 * 2 - 1).astype(jnp.int32)                    # +-1 tokens
    vis_quantizedz = [
        bitwise_tokens[..., si].astype(jnp.float32) * (1.0 / (2.0 ** si))
        for si in range(depth)
    ]

    commitment_loss = commitment_cost * jnp.sum(csum) / (B * HW * C) / depth
    # Eval-mode entropy terms (training entropy_loss_fn is undefined in the source).
    per_sample_entropy = jnp.zeros((), jnp.float32)
    avg_entropy = jnp.zeros((), jnp.float32)
    entropy_loss = jnp.zeros((), jnp.float32)
    loss = entropy_loss + commitment_loss

    result_dict = dict(
        quantizer_loss=loss,
        commitment_loss=commitment_loss,
        entropy_loss=entropy_loss,
        per_sample_entropy=per_sample_entropy,
        avg_entropy=avg_entropy,
        min_encoding_indices=min_encoding_indices,
        bitwise_tokens=bitwise_tokens,
        vis_quantizedz=vis_quantizedz,
    )
    return z_quantized, result_dict


def _reference(z_nchw, *, token_bits=10, commitment_cost=0.25, depth=DEPTH):
    """Pure-JAX reference mirroring the PyTorch forward (eval mode)."""
    B, C, H, W = z_nchw.shape
    b2i_int = (2 ** jnp.arange(token_bits, dtype=jnp.int32))
    z = jnp.transpose(z_nchw, (0, 2, 3, 1)).astype(jnp.float32)   # NHWC
    cum = jnp.zeros_like(z)
    commit = jnp.zeros((), jnp.float32)
    idxs, bits_l, vis_l = [], [], []
    for si in range(depth):
        residual = z - cum
        sign = jnp.where(residual > 0.0, 1.0, -1.0)
        bits_l.append(sign.astype(jnp.int32))
        zq = sign * (1.0 / (2.0 ** si))
        idxs.append(jnp.sum((zq > 0.0).astype(jnp.int32) * b2i_int, axis=-1))
        cum = cum + zq
        vis_l.append(zq)
        commit = commit + commitment_cost * jnp.mean((zq - residual) ** 2)
    commit = commit / depth
    return dict(
        z_quantized=jnp.transpose(cum, (0, 3, 1, 2)),
        commitment_loss=commit,
        min_encoding_indices=jnp.stack(idxs, axis=-1),
        bitwise_tokens=jnp.stack(bits_l, axis=-1),
        vis_quantizedz=vis_l,
    )


if __name__ == "__main__":
    token_bits = 10
    B, H, W = 2, 32, 32
    key = jax.random.PRNGKey(0)
    x = jax.random.normal(key, (B, token_bits, H, W), dtype=jnp.float32)

    zq, res = lookup_free_quantize(x, token_bits=token_bits)
    jax.block_until_ready((zq, res))

    ref = _reference(x, token_bits=token_bits)
    np.testing.assert_allclose(np.asarray(zq), np.asarray(ref["z_quantized"]),
                               rtol=1e-6, atol=1e-6)
    np.testing.assert_array_equal(np.asarray(res["min_encoding_indices"]),
                                  np.asarray(ref["min_encoding_indices"]))
    np.testing.assert_array_equal(np.asarray(res["bitwise_tokens"]),
                                  np.asarray(ref["bitwise_tokens"]))
    for a, b in zip(res["vis_quantizedz"], ref["vis_quantizedz"]):
        np.testing.assert_allclose(np.asarray(a), np.asarray(b), atol=1e-6)
    np.testing.assert_allclose(np.asarray(res["commitment_loss"]),
                               np.asarray(ref["commitment_loss"]),
                               rtol=1e-4, atol=1e-6)

    print("KERNEL_OK")
</pallas_src>

<mosaic_0001>
module attributes {stable_mosaic.version = 11 : i64} {
  func.func @_lfq_kernel(%arg0: i32, %arg1: i32, %arg2: memref<1x10x2x512xf32, #tpu.memory_space<vmem>>, %arg3: memref<1x10x2x512xf32, #tpu.memory_space<vmem>>, %arg4: memref<1x4x2x512xi32, #tpu.memory_space<vmem>>, %arg5: memref<1x1x1x1xf32, #tpu.memory_space<vmem>>) attributes {dimension_semantics = [#tpu.dimension_semantics<parallel>, #tpu.dimension_semantics<parallel>], iteration_bounds = array<i64: 2, 1>, scalar_prefetch = 0 : i64, scratch_operands = 0 : i64, tpu.core_type = #tpu.core_type<tc>, window_params = [{transform_indices = @transform_0, window_bounds = array<i64: 1, 10, 2, 512>}, {transform_indices = @transform_1, window_bounds = array<i64: 1, 10, 2, 512>}, {transform_indices = @transform_2, window_bounds = array<i64: 1, 4, 2, 512>}, {transform_indices = @transform_3, window_bounds = array<i64: 1, 1, 1, 1>}]} {
    %c0 = arith.constant 0 : index
    %c0_0 = arith.constant 0 : index
    %c0_1 = arith.constant 0 : index
    %c0_2 = arith.constant 0 : index
    %0 = vector.load %arg2[%c0, %c0_0, %c0_1, %c0_2] : memref<1x10x2x512xf32, #tpu.memory_space<vmem>>, vector<1x10x2x512xf32>
    %1 = vector.shape_cast %0 : vector<1x10x2x512xf32> to vector<10x2x512xf32>
    %cst = arith.constant 0.000000e+00 : f32
    %2 = vector.broadcast %cst : f32 to vector<10x2x512xf32>
    %cst_3 = arith.constant 0.000000e+00 : f32
    %3 = vector.broadcast %cst_3 : f32 to vector<10x2x512xf32>
    %4 = arith.subf %1, %2 : vector<10x2x512xf32>
    %cst_4 = arith.constant 0.000000e+00 : f32
    %5 = vector.broadcast %cst_4 : f32 to vector<10x2x512xf32>
    %6 = arith.cmpf ogt, %4, %5 : vector<10x2x512xf32>
    %cst_5 = arith.constant 1.000000e+00 : f32
    %cst_6 = arith.constant -1.000000e+00 : f32
    %7 = vector.broadcast %cst_5 : f32 to vector<10x2x512xf32>
    %8 = vector.broadcast %cst_6 : f32 to vector<10x2x512xf32>
    %9 = arith.select %6, %7, %8 : vector<10x2x512xi1>, vector<10x2x512xf32>
    %10 = vector.extract_strided_slice %6 {offsets = [0, 0, 0], sizes = [1, 2, 512], strides = [1, 1, 1]} : vector<10x2x512xi1> to vector<1x2x512xi1>
    %11 = vector.shape_cast %10 : vector<1x2x512xi1> to vector<2x512xi1>
    %c1_i32 = arith.constant 1 : i32
    %c0_i32 = arith.constant 0 : i32
    %12 = vector.broadcast %c1_i32 : i32 to vector<2x512xi32>
    %13 = vector.broadcast %c0_i32 : i32 to vector<2x512xi32>
    %14 = arith.select %11, %12, %13 : vector<2x512xi1>, vector<2x512xi32>
    %15 = vector.extract_strided_slice %6 {offsets = [1, 0, 0], sizes = [1, 2, 512], strides = [1, 1, 1]} : vector<10x2x512xi1> to vector<1x2x512xi1>
    %16 = vector.shape_cast %15 : vector<1x2x512xi1> to vector<2x512xi1>
    %c2_i32 = arith.constant 2 : i32
    %c0_i32_7 = arith.constant 0 : i32
    %17 = vector.broadcast %c2_i32 : i32 to vector<2x512xi32>
    %18 = vector.broadcast %c0_i32_7 : i32 to vector<2x512xi32>
    %19 = arith.select %16, %17, %18 : vector<2x512xi1>, vector<2x512xi32>
    %20 = arith.addi %14, %19 : vector<2x512xi32>
    %21 = vector.extract_strided_slice %6 {offsets = [2, 0, 0], sizes = [1, 2, 512], strides = [1, 1, 1]} : vector<10x2x512xi1> to vector<1x2x512xi1>
    %22 = vector.shape_cast %21 : vector<1x2x512xi1> to vector<2x512xi1>
    %c4_i32 = arith.constant 4 : i32
    %c0_i32_8 = arith.constant 0 : i32
    %23 = vector.broadcast %c4_i32 : i32 to vector<2x512xi32>
    %24 = vector.broadcast %c0_i32_8 : i32 to vector<2x512xi32>
    %25 = arith.select %22, %23, %24 : vector<2x512xi1>, vector<2x512xi32>
    %26 = arith.addi %20, %25 : vector<2x512xi32>
    %27 = vector.extract_strided_slice %6 {offsets = [3, 0, 0], sizes = [1, 2, 512], strides = [1, 1, 1]} : vector<10x2x512xi1> to vector<1x2x512xi1>
    %28 = vector.shape_cast %27 : vector<1x2x512xi1> to vector<2x512xi1>
    %c8_i32 = arith.constant 8 : i32
    %c0_i32_9 = arith.constant 0 : i32
    %29 = vector.broadcast %c8_i32 : i32 to vector<2x512xi32>
    %30 = vector.broadcast %c0_i32_9 : i32 to vector<2x512xi32>
    %31 = arith.select %28, %29, %30 : vector<2x512xi1>, vector<2x512xi32>
    %32 = arith.addi %26, %31 : vector<2x512xi32>
    %33 = vector.extract_strided_slice %6 {offsets = [4, 0, 0], sizes = [1, 2, 512], strides = [1, 1, 1]} : vector<10x2x512xi1> to vector<1x2x512xi1>
    %34 = vector.shape_cast %33 : vector<1x2x512xi1> to vector<2x512xi1>
    %c16_i32 = arith.constant 16 : i32
    %c0_i32_10 = arith.constant 0 : i32
    %35 = vector.broadcast %c16_i32 : i32 to vector<2x512xi32>
    %36 = vector.broadcast %c0_i32_10 : i32 to vector<2x512xi32>
    %37 = arith.select %34, %35, %36 : vector<2x512xi1>, vector<2x512xi32>
    %38 = arith.addi %32, %37 : vector<2x512xi32>
    %39 = vector.extract_strided_slice %6 {offsets = [5, 0, 0], sizes = [1, 2, 512], strides = [1, 1, 1]} : vector<10x2x512xi1> to vector<1x2x512xi1>
    %40 = vector.shape_cast %39 : vector<1x2x512xi1> to vector<2x512xi1>
    %c32_i32 = arith.constant 32 : i32
    %c0_i32_11 = arith.constant 0 : i32
    %41 = vector.broadcast %c32_i32 : i32 to vector<2x512xi32>
    %42 = vector.broadcast %c0_i32_11 : i32 to vector<2x512xi32>
    %43 = arith.select %40, %41, %42 : vector<2x512xi1>, vector<2x512xi32>
    %44 = arith.addi %38, %43 : vector<2x512xi32>
    %45 = vector.extract_strided_slice %6 {offsets = [6, 0, 0], sizes = [1, 2, 512], strides = [1, 1, 1]} : vector<10x2x512xi1> to vector<1x2x512xi1>
    %46 = vector.shape_cast %45 : vector<1x2x512xi1> to vector<2x512xi1>
    %c64_i32 = arith.constant 64 : i32
    %c0_i32_12 = arith.constant 0 : i32
    %47 = vector.broadcast %c64_i32 : i32 to vector<2x512xi32>
    %48 = vector.broadcast %c0_i32_12 : i32 to vector<2x512xi32>
    %49 = arith.select %46, %47, %48 : vector<2x512xi1>, vector<2x512xi32>
    %50 = arith.addi %44, %49 : vector<2x512xi32>
    %51 = vector.extract_strided_slice %6 {offsets = [7, 0, 0], sizes = [1, 2, 512], strides = [1, 1, 1]} : vector<10x2x512xi1> to vector<1x2x512xi1>
    %52 = vector.shape_cast %51 : vector<1x2x512xi1> to vector<2x512xi1>
    %c128_i32 = arith.constant 128 : i32
    %c0_i32_13 = arith.constant 0 : i32
    %53 = vector.broadcast %c128_i32 : i32 to vector<2x512xi32>
    %54 = vector.broadcast %c0_i32_13 : i32 to vector<2x512xi32>
    %55 = arith.select %52, %53, %54 : vector<2x512xi1>, vector<2x512xi32>
    %56 = arith.addi %50, %55 : vector<2x512xi32>
    %57 = vector.extract_strided_slice %6 {offsets = [8, 0, 0], sizes = [1, 2, 512], strides = [1, 1, 1]} : vector<10x2x512xi1> to vector<1x2x512xi1>
    %58 = vector.shape_cast %57 : vector<1x2x512xi1> to vector<2x512xi1>
    %c256_i32 = arith.constant 256 : i32
    %c0_i32_14 = arith.constant 0 : i32
    %59 = vector.broadcast %c256_i32 : i32 to vector<2x512xi32>
    %60 = vector.broadcast %c0_i32_14 : i32 to vector<2x512xi32>
    %61 = arith.select %58, %59, %60 : vector<2x512xi1>, vector<2x512xi32>
    %62 = arith.addi %56, %61 : vector<2x512xi32>
    %63 = vector.extract_strided_slice %6 {offsets = [9, 0, 0], sizes = [1, 2, 512], strides = [1, 1, 1]} : vector<10x2x512xi1> to vector<1x2x512xi1>
    %64 = vector.shape_cast %63 : vector<1x2x512xi1> to vector<2x512xi1>
    %c512_i32 = arith.constant 512 : i32
    %c0_i32_15 = arith.constant 0 : i32
    %65 = vector.broadcast %c512_i32 : i32 to vector<2x512xi32>
    %66 = vector.broadcast %c0_i32_15 : i32 to vector<2x512xi32>
    %67 = arith.select %64, %65, %66 : vector<2x512xi1>, vector<2x512xi32>
    %68 = arith.addi %62, %67 : vector<2x512xi32>
    %c0_16 = arith.constant 0 : index
    %c0_17 = arith.constant 0 : index
    %c0_18 = arith.constant 0 : index
    %c0_19 = arith.constant 0 : index
    %69 = vector.load %arg4[%c0_16, %c0_17, %c0_18, %c0_19] : memref<1x4x2x512xi32, #tpu.memory_space<vmem>>, vector<1x1x2x512xi32>
    %70 = vector.shape_cast %69 : vector<1x1x2x512xi32> to vector<2x512xi32>
    %71 = vector.shape_cast %68 : vector<2x512xi32> to vector<1x1x2x512xi32>
    tpu.vector_store %arg4[%c0_16, %c0_17, %c0_18, %c0_19], %71 {strides = array<i32>} : memref<1x4x2x512xi32, #tpu.memory_space<vmem>>, vector<1x1x2x512xi32>,
    %72 = arith.addf %2, %9 : vector<10x2x512xf32>
    %73 = arith.subf %1, %72 : vector<10x2x512xf32>
    %74 = arith.mulf %73, %73 : vector<10x2x512xf32>
    %75 = arith.addf %3, %74 : vector<10x2x512xf32>
    %cst_20 = arith.constant 0.000000e+00 : f32
    %76 = vector.broadcast %cst_20 : f32 to vector<10x2x512xf32>
    %77 = arith.cmpf ogt, %73, %76 : vector<10x2x512xf32>
    %cst_21 = arith.constant 5.000000e-01 : f32
    %cst_22 = arith.constant -5.000000e-01 : f32
    %78 = vector.broadcast %cst_21 : f32 to vector<10x2x512xf32>
    %79 = vector.broadcast %cst_22 : f32 to vector<10x2x512xf32>
    %80 = arith.select %77, %78, %79 : vector<10x2x512xi1>, vector<10x2x512xf32>
    %81 = vector.extract_strided_slice %77 {offsets = [0, 0, 0], sizes = [1, 2, 512], strides = [1, 1, 1]} : vector<10x2x512xi1> to vector<1x2x512xi1>
    %82 = vector.shape_cast %81 : vector<1x2x512xi1> to vector<2x512xi1>
    %c1_i32_23 = arith.constant 1 : i32
    %c0_i32_24 = arith.constant 0 : i32
    %83 = vector.broadcast %c1_i32_23 : i32 to vector<2x512xi32>
    %84 = vector.broadcast %c0_i32_24 : i32 to vector<2x512xi32>
    %85 = arith.select %82, %83, %84 : vector<2x512xi1>, vector<2x512xi32>
    %86 = vector.extract_strided_slice %77 {offsets = [1, 0, 0], sizes = [1, 2, 512], strides = [1, 1, 1]} : vector<10x2x512xi1> to vector<1x2x512xi1>
    %87 = vector.shape_cast %86 : vector<1x2x512xi1> to vector<2x512xi1>
    %c2_i32_25 = arith.constant 2 : i32
    %c0_i32_26 = arith.constant 0 : i32
    %88 = vector.broadcast %c2_i32_25 : i32 to vector<2x512xi32>
    %89 = vector.broadcast %c0_i32_26 : i32 to vector<2x512xi32>
    %90 = arith.select %87, %88, %89 : vector<2x512xi1>, vector<2x512xi32>
    %91 = arith.addi %85, %90 : vector<2x512xi32>
    %92 = vector.extract_strided_slice %77 {offsets = [2, 0, 0], sizes = [1, 2, 512], strides = [1, 1, 1]} : vector<10x2x512xi1> to vector<1x2x512xi1>
    %93 = vector.shape_cast %92 : vector<1x2x512xi1> to vector<2x512xi1>
    %c4_i32_27 = arith.constant 4 : i32
    %c0_i32_28 = arith.constant 0 : i32
    %94 = vector.broadcast %c4_i32_27 : i32 to vector<2x512xi32>
    %95 = vector.broadcast %c0_i32_28 : i32 to vector<2x512xi32>
    %96 = arith.select %93, %94, %95 : vector<2x512xi1>, vector<2x512xi32>
    %97 = arith.addi %91, %96 : vector<2x512xi32>
    %98 = vector.extract_strided_slice %77 {offsets = [3, 0, 0], sizes = [1, 2, 512], strides = [1, 1, 1]} : vector<10x2x512xi1> to vector<1x2x512xi1>
    %99 = vector.shape_cast %98 : vector<1x2x512xi1> to vector<2x512xi1>
    %c8_i32_29 = arith.constant 8 : i32
    %c0_i32_30 = arith.constant 0 : i32
    %100 = vector.broadcast %c8_i32_29 : i32 to vector<2x512xi32>
    %101 = vector.broadcast %c0_i32_30 : i32 to vector<2x512xi32>
    %102 = arith.select %99, %100, %101 : vector<2x512xi1>, vector<2x512xi32>
    %103 = arith.addi %97, %102 : vector<2x512xi32>
    %104 = vector.extract_strided_slice %77 {offsets = [4, 0, 0], sizes = [1, 2, 512], strides = [1, 1, 1]} : vector<10x2x512xi1> to vector<1x2x512xi1>
    %105 = vector.shape_cast %104 : vector<1x2x512xi1> to vector<2x512xi1>
    %c16_i32_31 = arith.constant 16 : i32
    %c0_i32_32 = arith.constant 0 : i32
    %106 = vector.broadcast %c16_i32_31 : i32 to vector<2x512xi32>
    %107 = vector.broadcast %c0_i32_32 : i32 to vector<2x512xi32>
    %108 = arith.select %105, %106, %107 : vector<2x512xi1>, vector<2x512xi32>
    %109 = arith.addi %103, %108 : vector<2x512xi32>
    %110 = vector.extract_strided_slice %77 {offsets = [5, 0, 0], sizes = [1, 2, 512], strides = [1, 1, 1]} : vector<10x2x512xi1> to vector<1x2x512xi1>
    %111 = vector.shape_cast %110 : vector<1x2x512xi1> to vector<2x512xi1>
    %c32_i32_33 = arith.constant 32 : i32
    %c0_i32_34 = arith.constant 0 : i32
    %112 = vector.broadcast %c32_i32_33 : i32 to vector<2x512xi32>
    %113 = vector.broadcast %c0_i32_34 : i32 to vector<2x512xi32>
    %114 = arith.select %111, %112, %113 : vector<2x512xi1>, vector<2x512xi32>
    %115 = arith.addi %109, %114 : vector<2x512xi32>
    %116 = vector.extract_strided_slice %77 {offsets = [6, 0, 0], sizes = [1, 2, 512], strides = [1, 1, 1]} : vector<10x2x512xi1> to vector<1x2x512xi1>
    %117 = vector.shape_cast %116 : vector<1x2x512xi1> to vector<2x512xi1>
    %c64_i32_35 = arith.constant 64 : i32
    %c0_i32_36 = arith.constant 0 : i32
    %118 = vector.broadcast %c64_i32_35 : i32 to vector<2x512xi32>
    %119 = vector.broadcast %c0_i32_36 : i32 to vector<2x512xi32>
    %120 = arith.select %117, %118, %119 : vector<2x512xi1>, vector<2x512xi32>
    %121 = arith.addi %115, %120 : vector<2x512xi32>
    %122 = vector.extract_strided_slice %77 {offsets = [7, 0, 0], sizes = [1, 2, 512], strides = [1, 1, 1]} : vector<10x2x512xi1> to vector<1x2x512xi1>
    %123 = vector.shape_cast %122 : vector<1x2x512xi1> to vector<2x512xi1>
    %c128_i32_37 = arith.constant 128 : i32
    %c0_i32_38 = arith.constant 0 : i32
    %124 = vector.broadcast %c128_i32_37 : i32 to vector<2x512xi32>
    %125 = vector.broadcast %c0_i32_38 : i32 to vector<2x512xi32>
    %126 = arith.select %123, %124, %125 : vector<2x512xi1>, vector<2x512xi32>
    %127 = arith.addi %121, %126 : vector<2x512xi32>
    %128 = vector.extract_strided_slice %77 {offsets = [8, 0, 0], sizes = [1, 2, 512], strides = [1, 1, 1]} : vector<10x2x512xi1> to vector<1x2x512xi1>
    %129 = vector.shape_cast %128 : vector<1x2x512xi1> to vector<2x512xi1>
    %c256_i32_39 = arith.constant 256 : i32
    %c0_i32_40 = arith.constant 0 : i32
    %130 = vector.broadcast %c256_i32_39 : i32 to vector<2x512xi32>
    %131 = vector.broadcast %c0_i32_40 : i32 to vector<2x512xi32>
    %132 = arith.select %129, %130, %131 : vector<2x512xi1>, vector<2x512xi32>
    %133 = arith.addi %127, %132 : vector<2x512xi32>
    %134 = vector.extract_strided_slice %77 {offsets = [9, 0, 0], sizes = [1, 2, 512], strides = [1, 1, 1]} : vector<10x2x512xi1> to vector<1x2x512xi1>
    %135 = vector.shape_cast %134 : vector<1x2x512xi1> to vector<2x512xi1>
    %c512_i32_41 = arith.constant 512 : i32
    %c0_i32_42 = arith.constant 0 : i32
    %136 = vector.broadcast %c512_i32_41 : i32 to vector<2x512xi32>
    %137 = vector.broadcast %c0_i32_42 : i32 to vector<2x512xi32>
    %138 = arith.select %135, %136, %137 : vector<2x512xi1>, vector<2x512xi32>
    %139 = arith.addi %133, %138 : vector<2x512xi32>
    %c0_43 = arith.constant 0 : index
    %c1 = arith.constant 1 : index
    %c0_44 = arith.constant 0 : index
    %c0_45 = arith.constant 0 : index
    %140 = vector.load %arg4[%c0_43, %c1, %c0_44, %c0_45] : memref<1x4x2x512xi32, #tpu.memory_space<vmem>>, vector<1x1x2x512xi32>
    %141 = vector.shape_cast %140 : vector<1x1x2x512xi32> to vector<2x512xi32>
    %142 = vector.shape_cast %139 : vector<2x512xi32> to vector<1x1x2x512xi32>
    tpu.vector_store %arg4[%c0_43, %c1, %c0_44, %c0_45], %142 {strides = array<i32>} : memref<1x4x2x512xi32, #tpu.memory_space<vmem>>, vector<1x1x2x512xi32>,
    %143 = arith.addf %72, %80 : vector<10x2x512xf32>
    %144 = arith.subf %1, %143 : vector<10x2x512xf32>
    %145 = arith.mulf %144, %144 : vector<10x2x512xf32>
    %146 = arith.addf %75, %145 : vector<10x2x512xf32>
    %cst_46 = arith.constant 0.000000e+00 : f32
    %147 = vector.broadcast %cst_46 : f32 to vector<10x2x512xf32>
    %148 = arith.cmpf ogt, %144, %147 : vector<10x2x512xf32>
    %cst_47 = arith.constant 2.500000e-01 : f32
    %cst_48 = arith.constant -2.500000e-01 : f32
    %149 = vector.broadcast %cst_47 : f32 to vector<10x2x512xf32>
    %150 = vector.broadcast %cst_48 : f32 to vector<10x2x512xf32>
    %151 = arith.select %148, %149, %150 : vector<10x2x512xi1>, vector<10x2x512xf32>
    %152 = vector.extract_strided_slice %148 {offsets = [0, 0, 0], sizes = [1, 2, 512], strides = [1, 1, 1]} : vector<10x2x512xi1> to vector<1x2x512xi1>
    %153 = vector.shape_cast %152 : vector<1x2x512xi1> to vector<2x512xi1>
    %c1_i32_49 = arith.constant 1 : i32
    %c0_i32_50 = arith.constant 0 : i32
    %154 = vector.broadcast %c1_i32_49 : i32 to vector<2x512xi32>
    %155 = vector.broadcast %c0_i32_50 : i32 to vector<2x512xi32>
    %156 = arith.select %153, %154, %155 : vector<2x512xi1>, vector<2x512xi32>
    %157 = vector.extract_strided_slice %148 {offsets = [1, 0, 0], sizes = [1, 2, 512], strides = [1, 1, 1]} : vector<10x2x512xi1> to vector<1x2x512xi1>
    %158 = vector.shape_cast %157 : vector<1x2x512xi1> to vector<2x512xi1>
    %c2_i32_51 = arith.constant 2 : i32
    %c0_i32_52 = arith.constant 0 : i32
    %159 = vector.broadcast %c2_i32_51 : i32 to vector<2x512xi32>
    %160 = vector.broadcast %c0_i32_52 : i32 to vector<2x512xi32>
    %161 = arith.select %158, %159, %160 : vector<2x512xi1>, vector<2x512xi32>
    %162 = arith.addi %156, %161 : vector<2x512xi32>
    %163 = vector.extract_strided_slice %148 {offsets = [2, 0, 0], sizes = [1, 2, 512], strides = [1, 1, 1]} : vector<10x2x512xi1> to vector<1x2x512xi1>
    %164 = vector.shape_cast %163 : vector<1x2x512xi1> to vector<2x512xi1>
    %c4_i32_53 = arith.constant 4 : i32
    %c0_i32_54 = arith.constant 0 : i32
    %165 = vector.broadcast %c4_i32_53 : i32 to vector<2x512xi32>
    %166 = vector.broadcast %c0_i32_54 : i32 to vector<2x512xi32>
    %167 = arith.select %164, %165, %166 : vector<2x512xi1>, vector<2x512xi32>
    %168 = arith.addi %162, %167 : vector<2x512xi32>
    %169 = vector.extract_strided_slice %148 {offsets = [3, 0, 0], sizes = [1, 2, 512], strides = [1, 1, 1]} : vector<10x2x512xi1> to vector<1x2x512xi1>
    %170 = vector.shape_cast %169 : vector<1x2x512xi1> to vector<2x512xi1>
    %c8_i32_55 = arith.constant 8 : i32
    %c0_i32_56 = arith.constant 0 : i32
    %171 = vector.broadcast %c8_i32_55 : i32 to vector<2x512xi32>
    %172 = vector.broadcast %c0_i32_56 : i32 to vector<2x512xi32>
    %173 = arith.select %170, %171, %172 : vector<2x512xi1>, vector<2x512xi32>
    %174 = arith.addi %168, %173 : vector<2x512xi32>
    %175 = vector.extract_strided_slice %148 {offsets = [4, 0, 0], sizes = [1, 2, 512], strides = [1, 1, 1]} : vector<10x2x512xi1> to vector<1x2x512xi1>
    %176 = vector.shape_cast %175 : vector<1x2x512xi1> to vector<2x512xi1>
    %c16_i32_57 = arith.constant 16 : i32
    %c0_i32_58 = arith.constant 0 : i32
    %177 = vector.broadcast %c16_i32_57 : i32 to vector<2x512xi32>
    %178 = vector.broadcast %c0_i32_58 : i32 to vector<2x512xi32>
    %179 = arith.select %176, %177, %178 : vector<2x512xi1>, vector<2x512xi32>
    %180 = arith.addi %174, %179 : vector<2x512xi32>
    %181 = vector.extract_strided_slice %148 {offsets = [5, 0, 0], sizes = [1, 2, 512], strides = [1, 1, 1]} : vector<10x2x512xi1> to vector<1x2x512xi1>
    %182 = vector.shape_cast %181 : vector<1x2x512xi1> to vector<2x512xi1>
    %c32_i32_59 = arith.constant 32 : i32
    %c0_i32_60 = arith.constant 0 : i32
    %183 = vector.broadcast %c32_i32_59 : i32 to vector<2x512xi32>
    %184 = vector.broadcast %c0_i32_60 : i32 to vector<2x512xi32>
    %185 = arith.select %182, %183, %184 : vector<2x512xi1>, vector<2x512xi32>
    %186 = arith.addi %180, %185 : vector<2x512xi32>
    %187 = vector.extract_strided_slice %148 {offsets = [6, 0, 0], sizes = [1, 2, 512], strides = [1, 1, 1]} : vector<10x2x512xi1> to vector<1x2x512xi1>
    %188 = vector.shape_cast %187 : vector<1x2x512xi1> to vector<2x512xi1>
    %c64_i32_61 = arith.constant 64 : i32
    %c0_i32_62 = arith.constant 0 : i32
    %189 = vector.broadcast %c64_i32_61 : i32 to vector<2x512xi32>
    %190 = vector.broadcast %c0_i32_62 : i32 to vector<2x512xi32>
    %191 = arith.select %188, %189, %190 : vector<2x512xi1>, vector<2x512xi32>
    %192 = arith.addi %186, %191 : vector<2x512xi32>
    %193 = vector.extract_strided_slice %148 {offsets = [7, 0, 0], sizes = [1, 2, 512], strides = [1, 1, 1]} : vector<10x2x512xi1> to vector<1x2x512xi1>
    %194 = vector.shape_cast %193 : vector<1x2x512xi1> to vector<2x512xi1>
    %c128_i32_63 = arith.constant 128 : i32
    %c0_i32_64 = arith.constant 0 : i32
    %195 = vector.broadcast %c128_i32_63 : i32 to vector<2x512xi32>
    %196 = vector.broadcast %c0_i32_64 : i32 to vector<2x512xi32>
    %197 = arith.select %194, %195, %196 : vector<2x512xi1>, vector<2x512xi32>
    %198 = arith.addi %192, %197 : vector<2x512xi32>
    %199 = vector.extract_strided_slice %148 {offsets = [8, 0, 0], sizes = [1, 2, 512], strides = [1, 1, 1]} : vector<10x2x512xi1> to vector<1x2x512xi1>
    %200 = vector.shape_cast %199 : vector<1x2x512xi1> to vector<2x512xi1>
    %c256_i32_65 = arith.constant 256 : i32
    %c0_i32_66 = arith.constant 0 : i32
    %201 = vector.broadcast %c256_i32_65 : i32 to vector<2x512xi32>
    %202 = vector.broadcast %c0_i32_66 : i32 to vector<2x512xi32>
    %203 = arith.select %200, %201, %202 : vector<2x512xi1>, vector<2x512xi32>
    %204 = arith.addi %198, %203 : vector<2x512xi32>
    %205 = vector.extract_strided_slice %148 {offsets = [9, 0, 0], sizes = [1, 2, 512], strides = [1, 1, 1]} : vector<10x2x512xi1> to vector<1x2x512xi1>
    %206 = vector.shape_cast %205 : vector<1x2x512xi1> to vector<2x512xi1>
    %c512_i32_67 = arith.constant 512 : i32
    %c0_i32_68 = arith.constant 0 : i32
    %207 = vector.broadcast %c512_i32_67 : i32 to vector<2x512xi32>
    %208 = vector.broadcast %c0_i32_68 : i32 to vector<2x512xi32>
    %209 = arith.select %206, %207, %208 : vector<2x512xi1>, vector<2x512xi32>
    %210 = arith.addi %204, %209 : vector<2x512xi32>
    %c0_69 = arith.constant 0 : index
    %c2 = arith.constant 2 : index
    %c0_70 = arith.constant 0 : index
    %c0_71 = arith.constant 0 : index
    %211 = vector.load %arg4[%c0_69, %c2, %c0_70, %c0_71] : memref<1x4x2x512xi32, #tpu.memory_space<vmem>>, vector<1x1x2x512xi32>
    %212 = vector.shape_cast %211 : vector<1x1x2x512xi32> to vector<2x512xi32>
    %213 = vector.shape_cast %210 : vector<2x512xi32> to vector<1x1x2x512xi32>
    tpu.vector_store %arg4[%c0_69, %c2, %c0_70, %c0_71], %213 {strides = array<i32>} : memref<1x4x2x512xi32, #tpu.memory_space<vmem>>, vector<1x1x2x512xi32>,
    %214 = arith.addf %143, %151 : vector<10x2x512xf32>
    %215 = arith.subf %1, %214 : vector<10x2x512xf32>
    %216 = arith.mulf %215, %215 : vector<10x2x512xf32>
    %217 = arith.addf %146, %216 : vector<10x2x512xf32>
    %cst_72 = arith.constant 0.000000e+00 : f32
    %218 = vector.broadcast %cst_72 : f32 to vector<10x2x512xf32>
    %219 = arith.cmpf ogt, %215, %218 : vector<10x2x512xf32>
    %cst_73 = arith.constant 1.250000e-01 : f32
    %cst_74 = arith.constant -1.250000e-01 : f32
    %220 = vector.broadcast %cst_73 : f32 to vector<10x2x512xf32>
    %221 = vector.broadcast %cst_74 : f32 to vector<10x2x512xf32>
    %222 = arith.select %219, %220, %221 : vector<10x2x512xi1>, vector<10x2x512xf32>
    %223 = vector.extract_strided_slice %219 {offsets = [0, 0, 0], sizes = [1, 2, 512], strides = [1, 1, 1]} : vector<10x2x512xi1> to vector<1x2x512xi1>
    %224 = vector.shape_cast %223 : vector<1x2x512xi1> to vector<2x512xi1>
    %c1_i32_75 = arith.constant 1 : i32
    %c0_i32_76 = arith.constant 0 : i32
    %225 = vector.broadcast %c1_i32_75 : i32 to vector<2x512xi32>
    %226 = vector.broadcast %c0_i32_76 : i32 to vector<2x512xi32>
    %227 = arith.select %224, %225, %226 : vector<2x512xi1>, vector<2x512xi32>
    %228 = vector.extract_strided_slice %219 {offsets = [1, 0, 0], sizes = [1, 2, 512], strides = [1, 1, 1]} : vector<10x2x512xi1> to vector<1x2x512xi1>
    %229 = vector.shape_cast %228 : vector<1x2x512xi1> to vector<2x512xi1>
    %c2_i32_77 = arith.constant 2 : i32
    %c0_i32_78 = arith.constant 0 : i32
    %230 = vector.broadcast %c2_i32_77 : i32 to vector<2x512xi32>
    %231 = vector.broadcast %c0_i32_78 : i32 to vector<2x512xi32>
    %232 = arith.select %229, %230, %231 : vector<2x512xi1>, vector<2x512xi32>
    %233 = arith.addi %227, %232 : vector<2x512xi32>
    %234 = vector.extract_strided_slice %219 {offsets = [2, 0, 0], sizes = [1, 2, 512], strides = [1, 1, 1]} : vector<10x2x512xi1> to vector<1x2x512xi1>
    %235 = vector.shape_cast %234 : vector<1x2x512xi1> to vector<2x512xi1>
    %c4_i32_79 = arith.constant 4 : i32
    %c0_i32_80 = arith.constant 0 : i32
    %236 = vector.broadcast %c4_i32_79 : i32 to vector<2x512xi32>
    %237 = vector.broadcast %c0_i32_80 : i32 to vector<2x512xi32>
    %238 = arith.select %235, %236, %237 : vector<2x512xi1>, vector<2x512xi32>
    %239 = arith.addi %233, %238 : vector<2x512xi32>
    %240 = vector.extract_strided_slice %219 {offsets = [3, 0, 0], sizes = [1, 2, 512], strides = [1, 1, 1]} : vector<10x2x512xi1> to vector<1x2x512xi1>
    %241 = vector.shape_cast %240 : vector<1x2x512xi1> to vector<2x512xi1>
    %c8_i32_81 = arith.constant 8 : i32
    %c0_i32_82 = arith.constant 0 : i32
    %242 = vector.broadcast %c8_i32_81 : i32 to vector<2x512xi32>
    %243 = vector.broadcast %c0_i32_82 : i32 to vector<2x512xi32>
    %244 = arith.select %241, %242, %243 : vector<2x512xi1>, vector<2x512xi32>
    %245 = arith.addi %239, %244 : vector<2x512xi32>
    %246 = vector.extract_strided_slice %219 {offsets = [4, 0, 0], sizes = [1, 2, 512], strides = [1, 1, 1]} : vector<10x2x512xi1> to vector<1x2x512xi1>
    %247 = vector.shape_cast %246 : vector<1x2x512xi1> to vector<2x512xi1>
    %c16_i32_83 = arith.constant 16 : i32
    %c0_i32_84 = arith.constant 0 : i32
    %248 = vector.broadcast %c16_i32_83 : i32 to vector<2x512xi32>
    %249 = vector.broadcast %c0_i32_84 : i32 to vector<2x512xi32>
    %250 = arith.select %247, %248, %249 : vector<2x512xi1>, vector<2x512xi32>
    %251 = arith.addi %245, %250 : vector<2x512xi32>
    %252 = vector.extract_strided_slice %219 {offsets = [5, 0, 0], sizes = [1, 2, 512], strides = [1, 1, 1]} : vector<10x2x512xi1> to vector<1x2x512xi1>
    %253 = vector.shape_cast %252 : vector<1x2x512xi1> to vector<2x512xi1>
    %c32_i32_85 = arith.constant 32 : i32
    %c0_i32_86 = arith.constant 0 : i32
    %254 = vector.broadcast %c32_i32_85 : i32 to vector<2x512xi32>
    %255 = vector.broadcast %c0_i32_86 : i32 to vector<2x512xi32>
    %256 = arith.select %253, %254, %255 : vector<2x512xi1>, vector<2x512xi32>
    %257 = arith.addi %251, %256 : vector<2x512xi32>
    %258 = vector.extract_strided_slice %219 {offsets = [6, 0, 0], sizes = [1, 2, 512], strides = [1, 1, 1]} : vector<10x2x512xi1> to vector<1x2x512xi1>
    %259 = vector.shape_cast %258 : vector<1x2x512xi1> to vector<2x512xi1>
    %c64_i32_87 = arith.constant 64 : i32
    %c0_i32_88 = arith.constant 0 : i32
    %260 = vector.broadcast %c64_i32_87 : i32 to vector<2x512xi32>
    %261 = vector.broadcast %c0_i32_88 : i32 to vector<2x512xi32>
    %262 = arith.select %259, %260, %261 : vector<2x512xi1>, vector<2x512xi32>
    %263 = arith.addi %257, %262 : vector<2x512xi32>
    %264 = vector.extract_strided_slice %219 {offsets = [7, 0, 0], sizes = [1, 2, 512], strides = [1, 1, 1]} : vector<10x2x512xi1> to vector<1x2x512xi1>
    %265 = vector.shape_cast %264 : vector<1x2x512xi1> to vector<2x512xi1>
    %c128_i32_89 = arith.constant 128 : i32
    %c0_i32_90 = arith.constant 0 : i32
    %266 = vector.broadcast %c128_i32_89 : i32 to vector<2x512xi32>
    %267 = vector.broadcast %c0_i32_90 : i32 to vector<2x512xi32>
    %268 = arith.select %265, %266, %267 : vector<2x512xi1>, vector<2x512xi32>
    %269 = arith.addi %263, %268 : vector<2x512xi32>
    %270 = vector.extract_strided_slice %219 {offsets = [8, 0, 0], sizes = [1, 2, 512], strides = [1, 1, 1]} : vector<10x2x512xi1> to vector<1x2x512xi1>
    %271 = vector.shape_cast %270 : vector<1x2x512xi1> to vector<2x512xi1>
    %c256_i32_91 = arith.constant 256 : i32
    %c0_i32_92 = arith.constant 0 : i32
    %272 = vector.broadcast %c256_i32_91 : i32 to vector<2x512xi32>
    %273 = vector.broadcast %c0_i32_92 : i32 to vector<2x512xi32>
    %274 = arith.select %271, %272, %273 : vector<2x512xi1>, vector<2x512xi32>
    %275 = arith.addi %269, %274 : vector<2x512xi32>
    %276 = vector.extract_strided_slice %219 {offsets = [9, 0, 0], sizes = [1, 2, 512], strides = [1, 1, 1]} : vector<10x2x512xi1> to vector<1x2x512xi1>
    %277 = vector.shape_cast %276 : vector<1x2x512xi1> to vector<2x512xi1>
    %c512_i32_93 = arith.constant 512 : i32
    %c0_i32_94 = arith.constant 0 : i32
    %278 = vector.broadcast %c512_i32_93 : i32 to vector<2x512xi32>
    %279 = vector.broadcast %c0_i32_94 : i32 to vector<2x512xi32>
    %280 = arith.select %277, %278, %279 : vector<2x512xi1>, vector<2x512xi32>
    %281 = arith.addi %275, %280 : vector<2x512xi32>
    %c0_95 = arith.constant 0 : index
    %c3 = arith.constant 3 : index
    %c0_96 = arith.constant 0 : index
    %c0_97 = arith.constant 0 : index
    %282 = vector.load %arg4[%c0_95, %c3, %c0_96, %c0_97] : memref<1x4x2x512xi32, #tpu.memory_space<vmem>>, vector<1x1x2x512xi32>
    %283 = vector.shape_cast %282 : vector<1x1x2x512xi32> to vector<2x512xi32>
    %284 = vector.shape_cast %281 : vector<2x512xi32> to vector<1x1x2x512xi32>
    tpu.vector_store %arg4[%c0_95, %c3, %c0_96, %c0_97], %284 {strides = array<i32>} : memref<1x4x2x512xi32, #tpu.memory_space<vmem>>, vector<1x1x2x512xi32>,
    %285 = arith.addf %214, %222 : vector<10x2x512xf32>
    %286 = arith.subf %1, %285 : vector<10x2x512xf32>
    %287 = arith.mulf %286, %286 : vector<10x2x512xf32>
    %288 = arith.addf %217, %287 : vector<10x2x512xf32>
    %c0_98 = arith.constant 0 : index
    %c0_99 = arith.constant 0 : index
    %c0_100 = arith.constant 0 : index
    %c0_101 = arith.constant 0 : index
    %289 = vector.load %arg3[%c0_98, %c0_99, %c0_100, %c0_101] : memref<1x10x2x512xf32, #tpu.memory_space<vmem>>, vector<1x10x2x512xf32>
    %290 = vector.shape_cast %289 : vector<1x10x2x512xf32> to vector<10x2x512xf32>
    %291 = vector.shape_cast %285 : vector<10x2x512xf32> to vector<1x10x2x512xf32>
    tpu.vector_store %arg3[%c0_98, %c0_99, %c0_100, %c0_101], %291 {strides = array<i32>} : memref<1x10x2x512xf32, #tpu.memory_space<vmem>>, vector<1x10x2x512xf32>,
    %cst_102 = arith.constant dense<0.000000e+00> : vector<2x512xf32>
    %292 = vector.multi_reduction <add>, %288, %cst_102 [0] : vector<10x2x512xf32> to vector<2x512xf32>
    %293 = vector.shape_cast %292 : vector<2x512xf32> to vector<1x2x512xf32>
    %cst_103 = arith.constant dense<0.000000e+00> : vector<1xf32>
    %294 = vector.multi_reduction <add>, %293, %cst_103 [1, 2] : vector<1x2x512xf32> to vector<1xf32>
    %295 = vector.shape_cast %294 : vector<1xf32> to vector<1x1x1xf32>
    %296 = vector.extract %295[0, 0, 0] : f32 from vector<1x1x1xf32>
    %297 = vector.broadcast %296 : f32 to vector<1x1xf32>
    %298 = vector.shape_cast %297 : vector<1x1xf32> to vector<1x1x1x1xf32>
    %c0_104 = arith.constant 0 : index
    %c0_105 = arith.constant 0 : index
    %c0_106 = arith.constant 0 : index
    %c0_107 = arith.constant 0 : index
    %299 = vector.load %arg5[%c0_104, %c0_105, %c0_106, %c0_107] : memref<1x1x1x1xf32, #tpu.memory_space<vmem>>, vector<1x1x1x1xf32>
    tpu.vector_store %arg5[%c0_104, %c0_105, %c0_106, %c0_107], %298 {strides = array<i32>} : memref<1x1x1x1xf32, #tpu.memory_space<vmem>>, vector<1x1x1x1xf32>,
    return
  }
  func.func @transform_0(%arg0: i32, %arg1: i32) -> (i32, i32, i32, i32) {
    %c0_i32 = arith.constant 0 : i32
    %c0_i32_0 = arith.constant 0 : i32
    %c0_i32_1 = arith.constant 0 : i32
    return %arg0, %c0_i32, %arg1, %c0_i32_0 : i32, i32, i32, i32
  }
  func.func @transform_1(%arg0: i32, %arg1: i32) -> (i32, i32, i32, i32) {
    %c0_i32 = arith.constant 0 : i32
    %c0_i32_0 = arith.constant 0 : i32
    %c0_i32_1 = arith.constant 0 : i32
    return %arg0, %c0_i32, %arg1, %c0_i32_0 : i32, i32, i32, i32
  }
  func.func @transform_2(%arg0: i32, %arg1: i32) -> (i32, i32, i32, i32) {
    %c0_i32 = arith.constant 0 : i32
    %c0_i32_0 = arith.constant 0 : i32
    %c0_i32_1 = arith.constant 0 : i32
    return %arg0, %c0_i32, %arg1, %c0_i32_0 : i32, i32, i32, i32
  }
  func.func @transform_3(%arg0: i32, %arg1: i32) -> (i32, i32, i32, i32) {
    %c0_i32 = arith.constant 0 : i32
    %c0_i32_0 = arith.constant 0 : i32
    %c0_i32_1 = arith.constant 0 : i32
    return %arg0, %arg1, %c0_i32, %c0_i32_0 : i32, i32, i32, i32
  }
}

</mosaic_0001>

<llo_original>
// kernel: tpu_custom_call.1
$region0: #{tpu_custom_call.1}
  #allocation0 [shape = 'u32[]', space=smem, size = 0x4, offset = 0x4, fixed_abs, tag = 'smem constant byte address 0x4 - core index']
  #allocation1 [shape = 'u32[144,128]{1,0:T(1,128)}', space=vmem, size = 0x12000, scoped, tag = 'internal scratch']
  %s0 = inlined_call_operand.hbm [shape: f32[2,10,2,512], index: 0, kind: input, shape index: {}]
  %s1 = inlined_call_operand.hbm [shape: f32[2,10,2,512], index: 1, kind: output, shape index: {0}]
  %s2 = inlined_call_operand.hbm [shape: s32[2,4,2,512], index: 2, kind: output, shape index: {1}]
  %s3 = inlined_call_operand.vmem [shape: f32[2,1,1,1], index: 3, kind: output, shape index: {2}]
  %4 = xla_tuple %s1, %s2, %s3
  %s5 = sld [smem:[#allocation0]]
  $region57: #{tpu_custom_call.1} parent=0
    _
  %s7 = ssub.s32 1, %s5
  %s8 = scalar_select 0, %s7, %s5
  $region1: #{tpu_custom_call.1} parent=0
    #allocation2 [shape = 'u8[81920]{0}', space=vmem, size = 0x14000, scoped, tag = 'input window, operand 0']
    #allocation3 [shape = 's32[2]{0}', space=sflag, size = 0x8, scoped, tag = 'scoped memory for tpu_custom_call.1']
    #allocation4 [shape = 's32[2]{0}', space=sflag, size = 0x8, scoped, tag = 'scoped memory for tpu_custom_call.1']
    #allocation5 [shape = 'u8[81920]{0}', space=vmem, size = 0x14000, scoped, tag = 'output window, operand 0']
    #allocation6 [shape = 'u8[32768]{0}', space=vmem, size = 0x8000, scoped, tag = 'output window, operand 1']
    #allocation7 [shape = 's32[2]{0}', space=sflag, size = 0x8, scoped, tag = 'scoped memory for tpu_custom_call.1']
    %9 = vsyncpa [#allocation3], 0
    %s10 = scalar_lea.sflag [#allocation3], 1
    %11 = vsyncpa %s10, 0
    %12 = vsyncpa [#allocation4], 0
    %s13 = scalar_lea.sflag [#allocation4], 1
    %14 = vsyncpa %s13, 0
    %15 = vsyncpa [#allocation7], 0
    %s16 = scalar_lea.sflag [#allocation7], 1
    %17 = vsyncpa %s16, 0
    loop: start=0, step=1, limit=4
    $region2: #{tpu_custom_call.1} parent=1 // loop_pre_header
      _
    $region3: #{tpu_custom_call.1} parent=1 // loop_header
      %s19 = sphi 0, %s23
      %p20 = scmp.ge.s32.totalorder %s19, 4
      %s26 = sphi 0, %s38
      %s27 = sphi 0, %s34
      %s28 = sphi 0, %s26
      %s29 = sphi 0, %s27
      %s30 = sphi 0, %s28
      %s31 = sphi 0, %s29
      %s43 = sphi 0, %s45
      %s46 = sphi 0, %s43
      %s47 = sphi 0, %s46
      %s63 = sphi 0, %s47
      %s71 = sphi 0, %s73
      %s74 = sphi 0, %s71
      %s75 = sphi 0, %s74
      %s91 = sphi 0, %s75
      %s99 = sphi 0, %s101
      %s102 = sphi 0, %s99
      %s103 = sphi 0, %s102
      %s119 = sphi 0, %s103
      %s127 = sphi 0, %s129
      %s130 = sphi 0, %s127
      %s131 = sphi 0, %s130
      %s147 = sphi 0, %s131
    $region4: #{tpu_custom_call.1} parent=1 // loop_header_branch
      %22 = sbr.rel (%p20) target = $region8
    $region5: #{tpu_custom_call.1} parent=1 // loop_body
      %s24 = ssub.s32 %s19, 1
      %s25 = ssub.s32 %s19, 2
      %s32 = sadd.s32 1, %s27
      %p33 = scmp.ge.s32.totalorder %s32, 1
      %s34 = scalar_select %p33, 0, %s32
      %s35 = sadd.s32 1, %s26
      %s36 = scalar_select %p33, %s35, %s26
      %p37 = scmp.ge.s32.totalorder %s36, 2
      %s38 = scalar_select %p37, 0, %s36
      %s39 = ssub.s32 %s26, %s38
      %s40 = ssub.s32 %s27, %s34
      %s41 = sor.u32 %s39, %s40
      %p42 = scmp.eq.s32.totalorder %s41, 0
      %s44 = sadd.s32 %s43, 1
      %s45 = scalar_select %p42, %s43, %s44
      %p48 = pneg %p42
      %p49 = scmp.eq.s32.totalorder %s19, 1
      %p50 = por %p48, %p49
      %p51 = scmp.ne.s32.totalorder %s43, %s46
      %p52 = scmp.eq.s32.totalorder %s19, 0
      %p53 = por %p51, %p52
      %p54 = scmp.ne.s32.totalorder %s43, %s46
      %p55 = scmp.eq.s32.totalorder %s24, 1
      %p56 = por %p54, %p55
      %p57 = scmp.ne.s32.totalorder %s46, %s47
      %p58 = scmp.eq.s32.totalorder %s24, 0
      %p59 = por %p57, %p58
      %p60 = scmp.ne.s32.totalorder %s46, %s47
      %p61 = scmp.eq.s32.totalorder %s25, 1
      %p62 = por %p60, %p61
      %p64 = scmp.ne.s32.totalorder %s47, %s63
      %p65 = scmp.eq.s32.totalorder %s25, 0
      %p66 = por %p64, %p65
      %s67 = ssub.s32 %s26, %s38
      %s68 = ssub.s32 %s27, %s34
      %s69 = sor.u32 %s67, %s68
      %p70 = scmp.eq.s32.totalorder %s69, 0
      %s72 = sadd.s32 %s71, 1
      %s73 = scalar_select %p70, %s71, %s72
      %p76 = pneg %p70
      %p77 = scmp.eq.s32.totalorder %s19, 1
      %p78 = por %p76, %p77
      %p79 = scmp.ne.s32.totalorder %s71, %s74
      %p80 = scmp.eq.s32.totalorder %s19, 0
      %p81 = por %p79, %p80
      %p82 = scmp.ne.s32.totalorder %s71, %s74
      %p83 = scmp.eq.s32.totalorder %s24, 1
      %p84 = por %p82, %p83
      %p85 = scmp.ne.s32.totalorder %s74, %s75
      %p86 = scmp.eq.s32.totalorder %s24, 0
      %p87 = por %p85, %p86
      %p88 = scmp.ne.s32.totalorder %s74, %s75
      %p89 = scmp.eq.s32.totalorder %s25, 1
      %p90 = por %p88, %p89
      %p92 = scmp.ne.s32.totalorder %s75, %s91
      %p93 = scmp.eq.s32.totalorder %s25, 0
      %p94 = por %p92, %p93
      %s95 = ssub.s32 %s26, %s38
      %s96 = ssub.s32 %s27, %s34
      %s97 = sor.u32 %s95, %s96
      %p98 = scmp.eq.s32.totalorder %s97, 0
      %s100 = sadd.s32 %s99, 1
      %s101 = scalar_select %p98, %s99, %s100
      %p104 = pneg %p98
      %p105 = scmp.eq.s32.totalorder %s19, 1
      %p106 = por %p104, %p105
      %p107 = scmp.ne.s32.totalorder %s99, %s102
      %p108 = scmp.eq.s32.totalorder %s19, 0
      %p109 = por %p107, %p108
      %p110 = scmp.ne.s32.totalorder %s99, %s102
      %p111 = scmp.eq.s32.totalorder %s24, 1
      %p112 = por %p110, %p111
      %p113 = scmp.ne.s32.totalorder %s102, %s103
      %p114 = scmp.eq.s32.totalorder %s24, 0
      %p115 = por %p113, %p114
      %p116 = scmp.ne.s32.totalorder %s102, %s103
      %p117 = scmp.eq.s32.totalorder %s25, 1
      %p118 = por %p116, %p117
      %p120 = scmp.ne.s32.totalorder %s103, %s119
      %p121 = scmp.eq.s32.totalorder %s25, 0
      %p122 = por %p120, %p121
      %s123 = ssub.s32 %s26, %s38
      %s124 = ssub.s32 %s27, %s34
      %s125 = sor.u32 %s123, %s124
      %p126 = scmp.eq.s32.totalorder %s125, 0
      %s128 = sadd.s32 %s127, 1
      %s129 = scalar_select %p126, %s127, %s128
      %p132 = pneg %p126
      %p133 = scmp.eq.s32.totalorder %s19, 1
      %p134 = por %p132, %p133
      %p135 = scmp.ne.s32.totalorder %s127, %s130
      %p136 = scmp.eq.s32.totalorder %s19, 0
      %p137 = por %p135, %p136
      %p138 = scmp.ne.s32.totalorder %s127, %s130
      %p139 = scmp.eq.s32.totalorder %s24, 1
      %p140 = por %p138, %p139
      %p141 = scmp.ne.s32.totalorder %s130, %s131
      %p142 = scmp.eq.s32.totalorder %s24, 0
      %p143 = por %p141, %p142
      %p144 = scmp.ne.s32.totalorder %s130, %s131
      %p145 = scmp.eq.s32.totalorder %s25, 1
      %p146 = por %p144, %p145
      %p148 = scmp.ne.s32.totalorder %s131, %s147
      %p149 = scmp.eq.s32.totalorder %s25, 0
      %p150 = por %p148, %p149
      %p151 = scmp.le.s32.totalorder 1, %s19
      %p152 = scmp.lt.s32.totalorder %s19, 3
      %p153 = pnand %p151, %p152
      %p154 = pneg %p153
      // Predicated region
      $region9: #{tpu_custom_call.1} parent=5 // pred_check
        _
      $region10: #{tpu_custom_call.1} parent=5 // pred_check_branch
        %156 = sbr.rel (%p153) target = $region12
      $region11: #{tpu_custom_call.1} parent=5 // pred_region
        %s157 = ssub.s32 %s19, 1
      $region12: #{tpu_custom_call.1} parent=5 // pred_fallthru
        _
      %p158 = scmp.lt.s32.totalorder %s19, 2
      // Predicated region
      $region13: #{tpu_custom_call.1} parent=5 // pred_check
        %p159 = pneg %p158
      $region14: #{tpu_custom_call.1} parent=5 // pred_check_branch
        %161 = sbr.rel (%p159) target = $region16
      $region15: #{tpu_custom_call.1} parent=5 // pred_region
        // Predicated region
        $region17: #{tpu_custom_call.1} parent=15 // pred_check
          %p162 = pneg %p53
        $region18: #{tpu_custom_call.1} parent=15 // pred_check_branch
          %164 = sbr.rel (%p162) target = $region20
        $region19: #{tpu_custom_call.1} parent=15 // pred_region
          %s165 = sand.u32 %s43, 1
          %s166 = scalar_lea.sflag [#allocation3], %s165
          %s167 = sand.u32 %s43, 1
          %s168 = smul.addr %s167, 80
          %s169 = scalar_lea.vmem [#allocation2], %s168
          %s171 = ssub.s32 1280, 1280
          %172 = vsyncadd %s166, %s171
          %s173 = smul.addr %s27, 4
          %s174 = smul.addr %s26, 40
          %s175 = sadd.s32 %s173, %s174
          %s176 = smul.addr %s175, 32
          %s177 = scalar_lea.hbm %s0, %s176
          %s178 = sshll.u32 %s169, 4
          %s179 = int_to_ptr.vmem [resolvable:$true] %s178
          %184 = dma.hbm_to_vmem [thread:$0]  %s177, 1280, %s179, %s166, 128, 128, 8
        $region20: #{tpu_custom_call.1} parent=15 // pred_fallthru
          _
      $region16: #{tpu_custom_call.1} parent=5 // pred_fallthru
        _
      %p185 = scmp.le.s32.totalorder 1, %s19
      %p186 = scmp.lt.s32.totalorder %s19, 3
      %p187 = pnand %p185, %p186
      %p188 = pneg %p187
      // Predicated region
      $region21: #{tpu_custom_call.1} parent=5 // pred_check
        _
      $region22: #{tpu_custom_call.1} parent=5 // pred_check_branch
        %190 = sbr.rel (%p187) target = $region24
      $region23: #{tpu_custom_call.1} parent=5 // pred_region
        %s191 = ssub.s32 %s19, 1
        %s192 = sand.u32 %s46, 1
        %s193 = scalar_lea.sflag [#allocation3], %s192
        %s194 = sand.u32 %s46, 1
        %s195 = smul.addr %s194, 80
        %s196 = scalar_lea.vmem [#allocation2], %s195
        // Predicated region
        $region25: #{tpu_custom_call.1} parent=23 // pred_check
          %p197 = pneg %p59
        $region26: #{tpu_custom_call.1} parent=23 // pred_check_branch
          %199 = sbr.rel (%p197) target = $region28
        $region27: #{tpu_custom_call.1} parent=23 // pred_region
          %200 = dma.done %s193, 1280
        $region28: #{tpu_custom_call.1} parent=23 // pred_fallthru
          _
        %s201 = sand.u32 %s46, 1
        %s202 = scalar_lea.sflag [#allocation3], %s201
        %s203 = sand.u32 %s46, 1
        %s204 = smul.addr %s203, 80
        %s205 = scalar_lea.vmem [#allocation2], %s204
        %p206 = pneg %p59
        %p207 = pneg %p56
        %p208 = pneg %p87
        %p209 = pneg %p84
        %s210 = sand.u32 %s74, 1
        %s211 = scalar_lea.sflag [#allocation4], %s210
        %s212 = sand.u32 %s74, 1
        %s213 = smul.addr %s212, 80
        %s214 = scalar_lea.vmem [#allocation5], %s213
        %p215 = pneg %p115
        %p216 = pneg %p112
        %s217 = sand.u32 %s102, 1
        %s218 = scalar_lea.sflag [#allocation7], %s217
        %s219 = sand.u32 %s102, 1
        %s220 = smul.addr %s219, 32
        %s221 = scalar_lea.vmem [#allocation6], %s220
        %p222 = pneg %p143
        %p223 = pneg %p140
        %p224 = scmp.lt.s32.totalorder %s28, 1
        %s225 = scalar_select %p224, %s28, 1
        %p226 = scmp.lt.s32.totalorder %s29, 0
        %s227 = scalar_select %p226, %s29, 0
        %s228 = sadd.s32 %s227, %s225
        %s229 = scalar_lea.vmem %s3, %s228
        %p230 = scmp.lt.s32.totalorder %s28, 1
        %s231 = scalar_select %p230, %s28, 1
        %p232 = scmp.lt.s32.totalorder %s29, 0
        %s233 = scalar_select %p232, %s29, 0
        %s234 = sadd.s32 %s233, %s231
        %s235 = scalar_lea.vmem %s3, %s234
        %v236 = vld [vmem:[%s196] sm:$0xff]
        %v237 = vld [vmem:[%s196 + $0x8] sm:$0xff]
        %v238 = vld [vmem:[%s196 + $0x10] sm:$0xff]
        %v239 = vld [vmem:[%s196 + $0x18] sm:$0xff]
        %v240 = vld [vmem:[%s196 + $0x20] sm:$0xff]
        %v241 = vld [vmem:[%s196 + $0x28] sm:$0xff]
        %v242 = vld [vmem:[%s196 + $0x30] sm:$0xff]
        %v243 = vld [vmem:[%s196 + $0x38] sm:$0xff]
        %v244 = vld [vmem:[%s196 + $0x40] sm:$0xff]
        %v245 = vld [vmem:[%s196 + $0x48] sm:$0xff]
        %vm246 = vcmp.gt.f32.partialorder %v236, 0.0
        %vm247 = vcmp.gt.f32.partialorder %v237, 0.0
        %vm248 = vcmp.gt.f32.partialorder %v238, 0.0
        %vm249 = vcmp.gt.f32.partialorder %v239, 0.0
        %vm250 = vcmp.gt.f32.partialorder %v240, 0.0
        %vm251 = vcmp.gt.f32.partialorder %v241, 0.0
        %vm252 = vcmp.gt.f32.partialorder %v242, 0.0
        %vm253 = vcmp.gt.f32.partialorder %v243, 0.0
        %vm254 = vcmp.gt.f32.partialorder %v244, 0.0
        %vm255 = vcmp.gt.f32.partialorder %v245, 0.0
        %v256 = vsel %vm246, 1.0, -1.0
        %v257 = vsel %vm247, 1.0, -1.0
        %v258 = vsel %vm248, 1.0, -1.0
        %v259 = vsel %vm249, 1.0, -1.0
        %v260 = vsel %vm250, 1.0, -1.0
        %v261 = vsel %vm251, 1.0, -1.0
        %v262 = vsel %vm252, 1.0, -1.0
        %v263 = vsel %vm253, 1.0, -1.0
        %v264 = vsel %vm254, 1.0, -1.0
        %v265 = vsel %vm255, 1.0, -1.0
        %v266 = vsel %vm246, 1, 0
        %v267 = vsel %vm247, 2, 0
        %v268 = vadd.s32 %v266, %v267
        %v269 = vsel %vm248, 4, 0
        %v270 = vadd.s32 %v268, %v269
        %v271 = vsel %vm249, 8, 0
        %v272 = vadd.s32 %v270, %v271
        %v273 = vsel %vm250, 16, 0
        %v274 = vadd.s32 %v272, %v273
        %v275 = vsel %vm251, 32, 0
        %v276 = vadd.s32 %v274, %v275
        %v277 = vsel %vm252, 64, 0
        %v278 = vadd.s32 %v276, %v277
        %v279 = vsel %vm253, 128, 0
        %v280 = vadd.s32 %v278, %v279
        %v281 = vsel %vm254, 256, 0
        %v282 = vadd.s32 %v280, %v281
        %v283 = vsel %vm255, 512, 0
        %v284 = vadd.s32 %v282, %v283
        %285 = vst [vmem:[%s221] sm:$0xff] %v284
        %v286 = vadd.f32 %v256, 0.0
        %v287 = vadd.f32 %v257, 0.0
        %v288 = vadd.f32 %v258, 0.0
        %v289 = vadd.f32 %v259, 0.0
        %v290 = vadd.f32 %v260, 0.0
        %v291 = vadd.f32 %v261, 0.0
        %v292 = vadd.f32 %v262, 0.0
        %v293 = vadd.f32 %v263, 0.0
        %v294 = vadd.f32 %v264, 0.0
        %v295 = vadd.f32 %v265, 0.0
        %v296 = vsub.f32 %v236, %v286
        %v297 = vsub.f32 %v237, %v287
        %v298 = vsub.f32 %v238, %v288
        %v299 = vsub.f32 %v239, %v289
        %v300 = vsub.f32 %v240, %v290
        %v301 = vsub.f32 %v241, %v291
        %v302 = vsub.f32 %v242, %v292
        %v303 = vsub.f32 %v243, %v293
        %v304 = vsub.f32 %v244, %v294
        %v305 = vsub.f32 %v245, %v295
        %v306 = vmul.f32 %v296, %v296
        %v307 = vmul.f32 %v297, %v297
        %v308 = vmul.f32 %v298, %v298
        %v309 = vmul.f32 %v299, %v299
        %v310 = vmul.f32 %v300, %v300
        %v311 = vmul.f32 %v301, %v301
        %v312 = vmul.f32 %v302, %v302
        %v313 = vmul.f32 %v303, %v303
        %v314 = vmul.f32 %v304, %v304
        %v315 = vmul.f32 %v305, %v305
        %v316 = vadd.f32 %v306, 0.0
        %v317 = vadd.f32 %v307, 0.0
        %v318 = vadd.f32 %v308, 0.0
        %v319 = vadd.f32 %v309, 0.0
        %v320 = vadd.f32 %v310, 0.0
        %v321 = vadd.f32 %v311, 0.0
        %v322 = vadd.f32 %v312, 0.0
        %v323 = vadd.f32 %v313, 0.0
        %v324 = vadd.f32 %v314, 0.0
        %v325 = vadd.f32 %v315, 0.0
        %vm326 = vcmp.gt.f32.partialorder %v296, 0.0
        %vm327 = vcmp.gt.f32.partialorder %v297, 0.0
        %vm328 = vcmp.gt.f32.partialorder %v298, 0.0
        %vm329 = vcmp.gt.f32.partialorder %v299, 0.0
        %vm330 = vcmp.gt.f32.partialorder %v300, 0.0
        %vm331 = vcmp.gt.f32.partialorder %v301, 0.0
        %vm332 = vcmp.gt.f32.partialorder %v302, 0.0
        %vm333 = vcmp.gt.f32.partialorder %v303, 0.0
        %vm334 = vcmp.gt.f32.partialorder %v304, 0.0
        %vm335 = vcmp.gt.f32.partialorder %v305, 0.0
        %v336 = vsel %vm326, 0.5, -0.5
        %v337 = vsel %vm327, 0.5, -0.5
        %v338 = vsel %vm328, 0.5, -0.5
        %v339 = vsel %vm329, 0.5, -0.5
        %v340 = vsel %vm330, 0.5, -0.5
        %v341 = vsel %vm331, 0.5, -0.5
        %v342 = vsel %vm332, 0.5, -0.5
        %v343 = vsel %vm333, 0.5, -0.5
        %v344 = vsel %vm334, 0.5, -0.5
        %v345 = vsel %vm335, 0.5, -0.5
        %v346 = vsel %vm326, 1, 0
        %v347 = vsel %vm327, 2, 0
        %v348 = vadd.s32 %v346, %v347
        %v349 = vsel %vm328, 4, 0
        %v350 = vadd.s32 %v348, %v349
        %v351 = vsel %vm329, 8, 0
        %v352 = vadd.s32 %v350, %v351
        %v353 = vsel %vm330, 16, 0
        %v354 = vadd.s32 %v352, %v353
        %v355 = vsel %vm331, 32, 0
        %v356 = vadd.s32 %v354, %v355
        %v357 = vsel %vm332, 64, 0
        %v358 = vadd.s32 %v356, %v357
        %v359 = vsel %vm333, 128, 0
        %v360 = vadd.s32 %v358, %v359
        %v361 = vsel %vm334, 256, 0
        %v362 = vadd.s32 %v360, %v361
        %v363 = vsel %vm335, 512, 0
        %v364 = vadd.s32 %v362, %v363
        %s365 = scalar_lea.vmem %s221, 8 [#allocation6]
        %366 = vst [vmem:[%s365] sm:$0xff] %v364
        %v367 = vadd.f32 %v286, %v336
        %v368 = vadd.f32 %v287, %v337
        %v369 = vadd.f32 %v288, %v338
        %v370 = vadd.f32 %v289, %v339
        %v371 = vadd.f32 %v290, %v340
        %v372 = vadd.f32 %v291, %v341
        %v373 = vadd.f32 %v292, %v342
        %v374 = vadd.f32 %v293, %v343
        %v375 = vadd.f32 %v294, %v344
        %v376 = vadd.f32 %v295, %v345
        %v377 = vsub.f32 %v236, %v367
        %v378 = vsub.f32 %v237, %v368
        %v379 = vsub.f32 %v238, %v369
        %v380 = vsub.f32 %v239, %v370
        %v381 = vsub.f32 %v240, %v371
        %v382 = vsub.f32 %v241, %v372
        %v383 = vsub.f32 %v242, %v373
        %v384 = vsub.f32 %v243, %v374
        %v385 = vsub.f32 %v244, %v375
        %v386 = vsub.f32 %v245, %v376
        %v387 = vmul.f32 %v377, %v377
        %v388 = vmul.f32 %v378, %v378
        %v389 = vmul.f32 %v379, %v379
        %v390 = vmul.f32 %v380, %v380
        %v391 = vmul.f32 %v381, %v381
        %v392 = vmul.f32 %v382, %v382
        %v393 = vmul.f32 %v383, %v383
        %v394 = vmul.f32 %v384, %v384
        %v395 = vmul.f32 %v385, %v385
        %v396 = vmul.f32 %v386, %v386
        %v397 = vadd.f32 %v316, %v387
        %v398 = vadd.f32 %v317, %v388
        %v399 = vadd.f32 %v318, %v389
        %v400 = vadd.f32 %v319, %v390
        %v401 = vadd.f32 %v320, %v391
        %v402 = vadd.f32 %v321, %v392
        %v403 = vadd.f32 %v322, %v393
        %v404 = vadd.f32 %v323, %v394
        %v405 = vadd.f32 %v324, %v395
        %v406 = vadd.f32 %v325, %v396
        %vm407 = vcmp.gt.f32.partialorder %v377, 0.0
        %vm408 = vcmp.gt.f32.partialorder %v378, 0.0
        %vm409 = vcmp.gt.f32.partialorder %v379, 0.0
        %vm410 = vcmp.gt.f32.partialorder %v380, 0.0
        %vm411 = vcmp.gt.f32.partialorder %v381, 0.0
        %vm412 = vcmp.gt.f32.partialorder %v382, 0.0
        %vm413 = vcmp.gt.f32.partialorder %v383, 0.0
        %vm414 = vcmp.gt.f32.partialorder %v384, 0.0
        %vm415 = vcmp.gt.f32.partialorder %v385, 0.0
        %vm416 = vcmp.gt.f32.partialorder %v386, 0.0
        %v417 = vsel %vm407, 0.25, -0.25
        %v418 = vsel %vm408, 0.25, -0.25
        %v419 = vsel %vm409, 0.25, -0.25
        %v420 = vsel %vm410, 0.25, -0.25
        %v421 = vsel %vm411, 0.25, -0.25
        %v422 = vsel %vm412, 0.25, -0.25
        %v423 = vsel %vm413, 0.25, -0.25
        %v424 = vsel %vm414, 0.25, -0.25
        %v425 = vsel %vm415, 0.25, -0.25
        %v426 = vsel %vm416, 0.25, -0.25
        %v427 = vsel %vm407, 1, 0
        %v428 = vsel %vm408, 2, 0
        %v429 = vadd.s32 %v427, %v428
        %v430 = vsel %vm409, 4, 0
        %v431 = vadd.s32 %v429, %v430
        %v432 = vsel %vm410, 8, 0
        %v433 = vadd.s32 %v431, %v432
        %v434 = vsel %vm411, 16, 0
        %v435 = vadd.s32 %v433, %v434
        %v436 = vsel %vm412, 32, 0
        %v437 = vadd.s32 %v435, %v436
        %v438 = vsel %vm413, 64, 0
        %v439 = vadd.s32 %v437, %v438
        %v440 = vsel %vm414, 128, 0
        %v441 = vadd.s32 %v439, %v440
        %v442 = vsel %vm415, 256, 0
        %v443 = vadd.s32 %v441, %v442
        %v444 = vsel %vm416, 512, 0
        %v445 = vadd.s32 %v443, %v444
        %s446 = scalar_lea.vmem %s221, 16 [#allocation6]
        %447 = vst [vmem:[%s446] sm:$0xff] %v445
        %v448 = vadd.f32 %v367, %v417
        %v449 = vadd.f32 %v368, %v418
        %v450 = vadd.f32 %v369, %v419
        %v451 = vadd.f32 %v370, %v420
        %v452 = vadd.f32 %v371, %v421
        %v453 = vadd.f32 %v372, %v422
        %v454 = vadd.f32 %v373, %v423
        %v455 = vadd.f32 %v374, %v424
        %v456 = vadd.f32 %v375, %v425
        %v457 = vadd.f32 %v376, %v426
        %v458 = vsub.f32 %v236, %v448
        %v459 = vsub.f32 %v237, %v449
        %v460 = vsub.f32 %v238, %v450
        %v461 = vsub.f32 %v239, %v451
        %v462 = vsub.f32 %v240, %v452
        %v463 = vsub.f32 %v241, %v453
        %v464 = vsub.f32 %v242, %v454
        %v465 = vsub.f32 %v243, %v455
        %v466 = vsub.f32 %v244, %v456
        %v467 = vsub.f32 %v245, %v457
        %v468 = vmul.f32 %v458, %v458
        %v469 = vmul.f32 %v459, %v459
        %v470 = vmul.f32 %v460, %v460
        %v471 = vmul.f32 %v461, %v461
        %v472 = vmul.f32 %v462, %v462
        %v473 = vmul.f32 %v463, %v463
        %v474 = vmul.f32 %v464, %v464
        %v475 = vmul.f32 %v465, %v465
        %v476 = vmul.f32 %v466, %v466
        %v477 = vmul.f32 %v467, %v467
        %v478 = vadd.f32 %v397, %v468
        %v479 = vadd.f32 %v398, %v469
        %v480 = vadd.f32 %v399, %v470
        %v481 = vadd.f32 %v400, %v471
        %v482 = vadd.f32 %v401, %v472
        %v483 = vadd.f32 %v402, %v473
        %v484 = vadd.f32 %v403, %v474
        %v485 = vadd.f32 %v404, %v475
        %v486 = vadd.f32 %v405, %v476
        %v487 = vadd.f32 %v406, %v477
        %vm488 = vcmp.gt.f32.partialorder %v458, 0.0
        %vm489 = vcmp.gt.f32.partialorder %v459, 0.0
        %vm490 = vcmp.gt.f32.partialorder %v460, 0.0
        %vm491 = vcmp.gt.f32.partialorder %v461, 0.0
        %vm492 = vcmp.gt.f32.partialorder %v462, 0.0
        %vm493 = vcmp.gt.f32.partialorder %v463, 0.0
        %vm494 = vcmp.gt.f32.partialorder %v464, 0.0
        %vm495 = vcmp.gt.f32.partialorder %v465, 0.0
        %vm496 = vcmp.gt.f32.partialorder %v466, 0.0
        %vm497 = vcmp.gt.f32.partialorder %v467, 0.0
        %v498 = vsel %vm488, 0.125, -0.125
        %v499 = vsel %vm489, 0.125, -0.125
        %v500 = vsel %vm490, 0.125, -0.125
        %v501 = vsel %vm491, 0.125, -0.125
        %v502 = vsel %vm492, 0.125, -0.125
        %v503 = vsel %vm493, 0.125, -0.125
        %v504 = vsel %vm494, 0.125, -0.125
        %v505 = vsel %vm495, 0.125, -0.125
        %v506 = vsel %vm496, 0.125, -0.125
        %v507 = vsel %vm497, 0.125, -0.125
        %v508 = vsel %vm488, 1, 0
        %v509 = vsel %vm489, 2, 0
        %v510 = vadd.s32 %v508, %v509
        %v511 = vsel %vm490, 4, 0
        %v512 = vadd.s32 %v510, %v511
        %v513 = vsel %vm491, 8, 0
        %v514 = vadd.s32 %v512, %v513
        %v515 = vsel %vm492, 16, 0
        %v516 = vadd.s32 %v514, %v515
        %v517 = vsel %vm493, 32, 0
        %v518 = vadd.s32 %v516, %v517
        %v519 = vsel %vm494, 64, 0
        %v520 = vadd.s32 %v518, %v519
        %v521 = vsel %vm495, 128, 0
        %v522 = vadd.s32 %v520, %v521
        %v523 = vsel %vm496, 256, 0
        %v524 = vadd.s32 %v522, %v523
        %v525 = vsel %vm497, 512, 0
        %v526 = vadd.s32 %v524, %v525
        %s527 = scalar_lea.vmem %s221, 24 [#allocation6]
        %528 = vst [vmem:[%s527] sm:$0xff] %v526
        %v529 = vadd.f32 %v448, %v498
        %v530 = vadd.f32 %v449, %v499
        %v531 = vadd.f32 %v450, %v500
        %v532 = vadd.f32 %v451, %v501
        %v533 = vadd.f32 %v452, %v502
        %v534 = vadd.f32 %v453, %v503
        %v535 = vadd.f32 %v454, %v504
        %v536 = vadd.f32 %v455, %v505
        %v537 = vadd.f32 %v456, %v506
        %v538 = vadd.f32 %v457, %v507
        %v539 = vsub.f32 %v236, %v529
        %v540 = vsub.f32 %v237, %v530
        %v541 = vsub.f32 %v238, %v531
        %v542 = vsub.f32 %v239, %v532
        %v543 = vsub.f32 %v240, %v533
        %v544 = vsub.f32 %v241, %v534
        %v545 = vsub.f32 %v242, %v535
        %v546 = vsub.f32 %v243, %v536
        %v547 = vsub.f32 %v244, %v537
        %v548 = vsub.f32 %v245, %v538
        %v549 = vmul.f32 %v539, %v539
        %v550 = vmul.f32 %v540, %v540
        %v551 = vmul.f32 %v541, %v541
        %v552 = vmul.f32 %v542, %v542
        %v553 = vmul.f32 %v543, %v543
        %v554 = vmul.f32 %v544, %v544
        %v555 = vmul.f32 %v545, %v545
        %v556 = vmul.f32 %v546, %v546
        %v557 = vmul.f32 %v547, %v547
        %v558 = vmul.f32 %v548, %v548
        %v559 = vadd.f32 %v478, %v549
        %v560 = vadd.f32 %v479, %v550
        %v561 = vadd.f32 %v480, %v551
        %v562 = vadd.f32 %v481, %v552
        %v563 = vadd.f32 %v482, %v553
        %v564 = vadd.f32 %v483, %v554
        %v565 = vadd.f32 %v484, %v555
        %v566 = vadd.f32 %v485, %v556
        %v567 = vadd.f32 %v486, %v557
        %v568 = vadd.f32 %v487, %v558
        %569 = vst [vmem:[%s214] sm:$0xff] %v529
        %570 = vst [vmem:[%s214 + $0x8] sm:$0xff] %v530
        %571 = vst [vmem:[%s214 + $0x10] sm:$0xff] %v531
        %572 = vst [vmem:[%s214 + $0x18] sm:$0xff] %v532
        %573 = vst [vmem:[%s214 + $0x20] sm:$0xff] %v533
        %574 = vst [vmem:[%s214 + $0x28] sm:$0xff] %v534
        %575 = vst [vmem:[%s214 + $0x30] sm:$0xff] %v535
        %576 = vst [vmem:[%s214 + $0x38] sm:$0xff] %v536
        %577 = vst [vmem:[%s214 + $0x40] sm:$0xff] %v537
        %578 = vst [vmem:[%s214 + $0x48] sm:$0xff] %v538
        %v589 = vcombine.high %v559, %v559
        %v591 = vunpack.c.l.s4 1983009808
        %v592 = vunpack.c.0.s8 %v591
        %v593 = vlaneseq
        %v594 = vshrl.u32 %v593, 7
        %v595 = vsub.s32 %v592, %v594
        %v596 = vrot.slane %v559, %v595
        %v598 = vunpack.c.l.s4 1983009808
        %v599 = vunpack.c.0.s8 %v598
        %v600 = vlaneseq
        %v601 = vshrl.u32 %v600, 7
        %v602 = vsub.s32 %v599, %v601
        %v603 = vrot.slane %v589, %v602
        %v604 = vcombine.high %v596, %v596
        %v605 = vcombine.high %v603, %v603
        %v606 = vcombine.high %v560, %v560
        %v608 = vunpack.c.l.s4 1983009808
        %v609 = vunpack.c.0.s8 %v608
        %v610 = vlaneseq
        %v611 = vshrl.u32 %v610, 7
        %v612 = vsub.s32 %v609, %v611
        %v613 = vrot.slane %v560, %v612
        %v615 = vunpack.c.l.s4 1983009808
        %v616 = vunpack.c.0.s8 %v615
        %v617 = vlaneseq
        %v618 = vshrl.u32 %v617, 7
        %v619 = vsub.s32 %v616, %v618
        %v620 = vrot.slane %v606, %v619
        %v621 = vcombine.high %v613, %v613
        %v622 = vcombine.high %v620, %v620
        %v623 = vcombine.high %v561, %v561
        %v625 = vunpack.c.l.s4 1983009808
        %v626 = vunpack.c.0.s8 %v625
        %v627 = vlaneseq
        %v628 = vshrl.u32 %v627, 7
        %v629 = vsub.s32 %v626, %v628
        %v630 = vrot.slane %v561, %v629
        %v632 = vunpack.c.l.s4 1983009808
        %v633 = vunpack.c.0.s8 %v632
        %v634 = vlaneseq
        %v635 = vshrl.u32 %v634, 7
        %v636 = vsub.s32 %v633, %v635
        %v637 = vrot.slane %v623, %v636
        %v638 = vcombine.high %v630, %v630
        %v639 = vcombine.high %v637, %v637
        %v640 = vcombine.high %v562, %v562
        %v642 = vunpack.c.l.s4 1983009808
        %v643 = vunpack.c.0.s8 %v642
        %v644 = vlaneseq
        %v645 = vshrl.u32 %v644, 7
        %v646 = vsub.s32 %v643, %v645
        %v647 = vrot.slane %v562, %v646
        %v649 = vunpack.c.l.s4 1983009808
        %v650 = vunpack.c.0.s8 %v649
        %v651 = vlaneseq
        %v652 = vshrl.u32 %v651, 7
        %v653 = vsub.s32 %v650, %v652
        %v654 = vrot.slane %v640, %v653
        %v655 = vcombine.high %v647, %v647
        %v656 = vcombine.high %v654, %v654
        %v657 = vcombine.high %v563, %v563
        %v659 = vunpack.c.l.s4 1983009808
        %v660 = vunpack.c.0.s8 %v659
        %v661 = vlaneseq
        %v662 = vshrl.u32 %v661, 7
        %v663 = vsub.s32 %v660, %v662
        %v664 = vrot.slane %v563, %v663
        %v666 = vunpack.c.l.s4 1983009808
        %v667 = vunpack.c.0.s8 %v666
        %v668 = vlaneseq
        %v669 = vshrl.u32 %v668, 7
        %v670 = vsub.s32 %v667, %v669
        %v671 = vrot.slane %v657, %v670
        %v672 = vcombine.high %v664, %v664
        %v673 = vcombine.high %v671, %v671
        %v674 = vcombine.high %v564, %v564
        %v676 = vunpack.c.l.s4 1983009808
        %v677 = vunpack.c.0.s8 %v676
        %v678 = vlaneseq
        %v679 = vshrl.u32 %v678, 7
        %v680 = vsub.s32 %v677, %v679
        %v681 = vrot.slane %v564, %v680
        %v683 = vunpack.c.l.s4 1983009808
        %v684 = vunpack.c.0.s8 %v683
        %v685 = vlaneseq
        %v686 = vshrl.u32 %v685, 7
        %v687 = vsub.s32 %v684, %v686
        %v688 = vrot.slane %v674, %v687
        %v689 = vcombine.high %v681, %v681
        %v690 = vcombine.high %v688, %v688
        %v691 = vcombine.high %v565, %v565
        %v693 = vunpack.c.l.s4 1983009808
        %v694 = vunpack.c.0.s8 %v693
        %v695 = vlaneseq
        %v696 = vshrl.u32 %v695, 7
        %v697 = vsub.s32 %v694, %v696
        %v698 = vrot.slane %v565, %v697
        %v700 = vunpack.c.l.s4 1983009808
        %v701 = vunpack.c.0.s8 %v700
        %v702 = vlaneseq
        %v703 = vshrl.u32 %v702, 7
        %v704 = vsub.s32 %v701, %v703
        %v705 = vrot.slane %v691, %v704
        %v706 = vcombine.high %v698, %v698
        %v707 = vcombine.high %v705, %v705
        %v708 = vcombine.high %v566, %v566
        %v710 = vunpack.c.l.s4 1983009808
        %v711 = vunpack.c.0.s8 %v710
        %v712 = vlaneseq
        %v713 = vshrl.u32 %v712, 7
        %v714 = vsub.s32 %v711, %v713
        %v715 = vrot.slane %v566, %v714
        %v717 = vunpack.c.l.s4 1983009808
        %v718 = vunpack.c.0.s8 %v717
        %v719 = vlaneseq
        %v720 = vshrl.u32 %v719, 7
        %v721 = vsub.s32 %v718, %v720
        %v722 = vrot.slane %v708, %v721
        %v723 = vcombine.high %v715, %v715
        %v724 = vcombine.high %v722, %v722
        %v725 = vcombine.high %v567, %v567
        %v727 = vunpack.c.l.s4 1983009808
        %v728 = vunpack.c.0.s8 %v727
        %v729 = vlaneseq
        %v730 = vshrl.u32 %v729, 7
        %v731 = vsub.s32 %v728, %v730
        %v732 = vrot.slane %v567, %v731
        %v734 = vunpack.c.l.s4 1983009808
        %v735 = vunpack.c.0.s8 %v734
        %v736 = vlaneseq
        %v737 = vshrl.u32 %v736, 7
        %v738 = vsub.s32 %v735, %v737
        %v739 = vrot.slane %v725, %v738
        %v740 = vcombine.high %v732, %v732
        %v741 = vcombine.high %v739, %v739
        %v742 = vcombine.high %v568, %v568
        %v744 = vunpack.c.l.s4 1983009808
        %v745 = vunpack.c.0.s8 %v744
        %v746 = vlaneseq
        %v747 = vshrl.u32 %v746, 7
        %v748 = vsub.s32 %v745, %v747
        %v749 = vrot.slane %v568, %v748
        %v751 = vunpack.c.l.s4 1983009808
        %v752 = vunpack.c.0.s8 %v751
        %v753 = vlaneseq
        %v754 = vshrl.u32 %v753, 7
        %v755 = vsub.s32 %v752, %v754
        %v756 = vrot.slane %v742, %v755
        %v757 = vcombine.high %v749, %v749
        %v758 = vcombine.high %v756, %v756
        %vm799 = vcmask 1041408
        %v800 = vsel %vm799, %v596, 0.0
        %v801 = vsel %vm799, %v613, 0.0
        %v802 = vadd.f32 %v800, %v801
        %v803 = vsel %vm799, %v630, 0.0
        %v804 = vadd.f32 %v802, %v803
        %v805 = vsel %vm799, %v647, 0.0
        %v806 = vadd.f32 %v804, %v805
        %v807 = vsel %vm799, %v664, 0.0
        %v808 = vadd.f32 %v806, %v807
        %v809 = vsel %vm799, %v681, 0.0
        %v810 = vadd.f32 %v808, %v809
        %v811 = vsel %vm799, %v698, 0.0
        %v812 = vadd.f32 %v810, %v811
        %v813 = vsel %vm799, %v715, 0.0
        %v814 = vadd.f32 %v812, %v813
        %v815 = vsel %vm799, %v732, 0.0
        %v816 = vadd.f32 %v814, %v815
        %v817 = vsel %vm799, %v749, 0.0
        %v818 = vadd.f32 %v816, %v817
        %v819 = vsel %vm799, %v604, 0.0
        %v820 = vsel %vm799, %v621, 0.0
        %v821 = vadd.f32 %v819, %v820
        %v822 = vsel %vm799, %v638, 0.0
        %v823 = vadd.f32 %v821, %v822
        %v824 = vsel %vm799, %v655, 0.0
        %v825 = vadd.f32 %v823, %v824
        %v826 = vsel %vm799, %v672, 0.0
        %v827 = vadd.f32 %v825, %v826
        %v828 = vsel %vm799, %v689, 0.0
        %v829 = vadd.f32 %v827, %v828
        %v830 = vsel %vm799, %v706, 0.0
        %v831 = vadd.f32 %v829, %v830
        %v832 = vsel %vm799, %v723, 0.0
        %v833 = vadd.f32 %v831, %v832
        %v834 = vsel %vm799, %v740, 0.0
        %v835 = vadd.f32 %v833, %v834
        %v836 = vsel %vm799, %v757, 0.0
        %v837 = vadd.f32 %v835, %v836
        %v838 = vsel %vm799, %v603, 0.0
        %v839 = vsel %vm799, %v620, 0.0
        %v840 = vadd.f32 %v838, %v839
        %v841 = vsel %vm799, %v637, 0.0
        %v842 = vadd.f32 %v840, %v841
        %v843 = vsel %vm799, %v654, 0.0
        %v844 = vadd.f32 %v842, %v843
        %v845 = vsel %vm799, %v671, 0.0
        %v846 = vadd.f32 %v844, %v845
        %v847 = vsel %vm799, %v688, 0.0
        %v848 = vadd.f32 %v846, %v847
        %v849 = vsel %vm799, %v705, 0.0
        %v850 = vadd.f32 %v848, %v849
        %v851 = vsel %vm799, %v722, 0.0
        %v852 = vadd.f32 %v850, %v851
        %v853 = vsel %vm799, %v739, 0.0
        %v854 = vadd.f32 %v852, %v853
        %v855 = vsel %vm799, %v756, 0.0
        %v856 = vadd.f32 %v854, %v855
        %v857 = vsel %vm799, %v605, 0.0
        %v858 = vsel %vm799, %v622, 0.0
        %v859 = vadd.f32 %v857, %v858
        %v860 = vsel %vm799, %v639, 0.0
        %v861 = vadd.f32 %v859, %v860
        %v862 = vsel %vm799, %v656, 0.0
        %v863 = vadd.f32 %v861, %v862
        %v864 = vsel %vm799, %v673, 0.0
        %v865 = vadd.f32 %v863, %v864
        %v866 = vsel %vm799, %v690, 0.0
        %v867 = vadd.f32 %v865, %v866
        %v868 = vsel %vm799, %v707, 0.0
        %v869 = vadd.f32 %v867, %v868
        %v870 = vsel %vm799, %v724, 0.0
        %v871 = vadd.f32 %v869, %v870
        %v872 = vsel %vm799, %v741, 0.0
        %v873 = vadd.f32 %v871, %v872
        %v874 = vsel %vm799, %v758, 0.0
        %v875 = vadd.f32 %v873, %v874
        %v876 = vsel %vm799, %v818, 0.0
        %v877 = vsel %vm799, %v837, 0.0
        %v878 = vadd.f32 %v876, %v877
        %v879 = vsel %vm799, %v856, 0.0
        %v880 = vadd.f32 %v878, %v879
        %v881 = vsel %vm799, %v875, 0.0
        %v882 = vadd.f32 %v880, %v881
        %883 = vadd.xlane.f32.xlu0 %v882
        %v884 = vpop.xlane.xlu0 %883
        %v885 = vrot.slane %v884, 4
        %v886 = vadd.f32 %v884, %v885
        %v887 = vrot.slane %v886, 2
        %v888 = vadd.f32 %v886, %v887
        %v889 = vrot.slane %v888, 1
        %v890 = vadd.f32 %v888, %v889
        %s891 = vtos %v890
        %v892 = vstv %s891
        %vm893 = vcmask 0
        %894 = vst.msk [vmem:[%s235] sm:$0x1] %vm893, %v892
        %s895 = sand.u32 %s74, 1
        %s896 = scalar_lea.sflag [#allocation4], %s895
        %s897 = sand.u32 %s74, 1
        %s898 = smul.addr %s897, 80
        %s899 = scalar_lea.vmem [#allocation5], %s898
        %s900 = sand.u32 %s102, 1
        %s901 = scalar_lea.sflag [#allocation7], %s900
        %s902 = sand.u32 %s102, 1
        %s903 = smul.addr %s902, 32
        %s904 = scalar_lea.vmem [#allocation6], %s903
        %p905 = scmp.lt.s32.totalorder %s28, 1
        %s906 = scalar_select %p905, %s28, 1
        %p907 = scmp.lt.s32.totalorder %s29, 0
        %s908 = scalar_select %p907, %s29, 0
        %s909 = sadd.s32 %s908, %s906
        %s910 = scalar_lea.vmem %s3, %s909
        // Predicated region
        $region29: #{tpu_custom_call.1} parent=23 // pred_check
          %p911 = pneg %p84
        $region30: #{tpu_custom_call.1} parent=23 // pred_check_branch
          %913 = sbr.rel (%p911) target = $region32
        $region31: #{tpu_custom_call.1} parent=23 // pred_region
          %s915 = ssub.s32 1280, 1280
          %916 = vsyncadd %s896, %s915
          %s917 = smul.addr %s29, 4
          %s918 = smul.addr %s28, 40
          %s919 = sadd.s32 %s917, %s918
          %s920 = smul.addr %s919, 32
          %s921 = scalar_lea.hbm %s1, %s920
          %s922 = sshll.u32 %s899, 4
          %s923 = int_to_ptr.vmem [resolvable:$true] %s922
          %928 = dma.vmem_to_hbm [thread:$0]  %s923, 1280, %s921, %s896, 128, 128, 8
        $region32: #{tpu_custom_call.1} parent=23 // pred_fallthru
          _
        // Predicated region
        $region33: #{tpu_custom_call.1} parent=23 // pred_check
          %p929 = pneg %p112
        $region34: #{tpu_custom_call.1} parent=23 // pred_check_branch
          %931 = sbr.rel (%p929) target = $region36
        $region35: #{tpu_custom_call.1} parent=23 // pred_region
          %s933 = ssub.s32 512, 512
          %934 = vsyncadd %s901, %s933
          %s935 = smul.addr %s29, 4
          %s936 = smul.addr %s28, 16
          %s937 = sadd.s32 %s935, %s936
          %s938 = smul.addr %s937, 32
          %s939 = scalar_lea.hbm %s2, %s938
          %s940 = sshll.u32 %s904, 4
          %s941 = int_to_ptr.vmem [resolvable:$true] %s940
          %946 = dma.vmem_to_hbm [thread:$0]  %s941, 512, %s939, %s901, 128, 128, 8
        $region36: #{tpu_custom_call.1} parent=23 // pred_fallthru
          _
        // Predicated region
        $region37: #{tpu_custom_call.1} parent=23 // pred_check
          %p947 = pneg %p140
        $region38: #{tpu_custom_call.1} parent=23 // pred_check_branch
          %949 = sbr.rel (%p947) target = $region40
        $region39: #{tpu_custom_call.1} parent=23 // pred_region
          _
        $region40: #{tpu_custom_call.1} parent=23 // pred_fallthru
          _
      $region24: #{tpu_custom_call.1} parent=5 // pred_fallthru
        _
      %p950 = scmp.le.s32.totalorder 2, %s19
      // Predicated region
      $region41: #{tpu_custom_call.1} parent=5 // pred_check
        %p951 = pneg %p950
      $region42: #{tpu_custom_call.1} parent=5 // pred_check_branch
        %953 = sbr.rel (%p951) target = $region44
      $region43: #{tpu_custom_call.1} parent=5 // pred_region
        %s954 = ssub.s32 %s19, 2
        // Predicated region
        $region45: #{tpu_custom_call.1} parent=43 // pred_check
          %p955 = pneg %p90
        $region46: #{tpu_custom_call.1} parent=43 // pred_check_branch
          %957 = sbr.rel (%p955) target = $region48
        $region47: #{tpu_custom_call.1} parent=43 // pred_region
          %s958 = sand.u32 %s75, 1
          %s959 = scalar_lea.sflag [#allocation4], %s958
          %s960 = sand.u32 %s75, 1
          %s961 = smul.addr %s960, 80
          %s962 = scalar_lea.vmem [#allocation5], %s961
          %963 = dma.done %s959, 1280
        $region48: #{tpu_custom_call.1} parent=43 // pred_fallthru
          _
        // Predicated region
        $region49: #{tpu_custom_call.1} parent=43 // pred_check
          %p964 = pneg %p118
        $region50: #{tpu_custom_call.1} parent=43 // pred_check_branch
          %966 = sbr.rel (%p964) target = $region52
        $region51: #{tpu_custom_call.1} parent=43 // pred_region
          %s967 = sand.u32 %s103, 1
          %s968 = scalar_lea.sflag [#allocation7], %s967
          %s969 = sand.u32 %s103, 1
          %s970 = smul.addr %s969, 32
          %s971 = scalar_lea.vmem [#allocation6], %s970
          %972 = dma.done %s968, 512
        $region52: #{tpu_custom_call.1} parent=43 // pred_fallthru
          _
        // Predicated region
        $region53: #{tpu_custom_call.1} parent=43 // pred_check
          %p973 = pneg %p146
        $region54: #{tpu_custom_call.1} parent=43 // pred_check_branch
          %975 = sbr.rel (%p973) target = $region56
        $region55: #{tpu_custom_call.1} parent=43 // pred_region
          %p976 = scmp.lt.s32.totalorder %s30, 1
          %s977 = scalar_select %p976, %s30, 1
          %p978 = scmp.lt.s32.totalorder %s31, 0
          %s979 = scalar_select %p978, %s31, 0
          %s980 = sadd.s32 %s979, %s977
          %s981 = scalar_lea.vmem %s3, %s980
        $region56: #{tpu_custom_call.1} parent=43 // pred_fallthru
          _
      $region44: #{tpu_custom_call.1} parent=5 // pred_fallthru
        _
    $region6: #{tpu_custom_call.1} parent=1 // loop_footer
      %s23 = sadd.s32 1, %s19
    $region7: #{tpu_custom_call.1} parent=1 // loop_footer_branch
      %18 = sbr.rel target = $region3
    $region8: #{tpu_custom_call.1} parent=1 // loop_exit
      _
    %982 = vsyncpa [#allocation3], 1
    %s983 = scalar_lea.sflag [#allocation3], 1
    %984 = vsyncpa %s983, 1
    %985 = vsyncpa [#allocation4], 1
    %s986 = scalar_lea.sflag [#allocation4], 1
    %987 = vsyncpa %s986, 1
    %988 = vsyncpa [#allocation7], 1
    %s989 = scalar_lea.sflag [#allocation7], 1
    %990 = vsyncpa %s989, 1

</llo_original>
